<compile_context>
chip_gen: v7x
topology: tpu7x:2x2x1
jax: 0.10.0
libtpu: 0.0.40
codegen_flags: <defaults>
</compile_context>

<pallas_src>
import math
import functools

import numpy as np
import jax
import jax.numpy as jnp
from jax.experimental import pallas as pl
from jax.experimental.pallas import tpu as pltpu

LN_EPS = 1e-6        # timm LayerNorm2d default eps
_HALO_L = 8          # left halo width in the dw-conv scratch (keeps interior store aligned)
_VMEM_LIMIT = 48 * 1024 * 1024


# ----------------------------- in-kernel helpers -----------------------------

def _silu(x):
    return x * jax.nn.sigmoid(x)


def _layernorm(x, gamma, beta):
    # LayerNorm over the channel (last) dim, biased variance, eps=1e-6
    mu = jnp.mean(x, axis=-1, keepdims=True)
    var = jnp.mean(jnp.square(x - mu), axis=-1, keepdims=True)
    return (x - mu) * jax.lax.rsqrt(var + LN_EPS) * gamma + beta


# ----------------------------- fused Bottleneck kernel -----------------------------

def _bottleneck_kernel(*refs, H, W, C, has_pos, has_pool, hq, wq):
    it = iter(refs)
    x_ref = next(it)
    pos_ref = next(it) if has_pos else None
    w1_ref, g1_ref, b1_ref = next(it), next(it), next(it)
    w2_ref, g2_ref, b2_ref = next(it), next(it), next(it)
    sw1_ref, sb1_ref, sw2_ref, sb2_ref = next(it), next(it), next(it), next(it)
    w3_ref, g3_ref, b3_ref = next(it), next(it), next(it)
    pm_ref = next(it) if has_pool else None
    o_ref = next(it)
    pad_ref = next(it)                                   # VMEM scratch (H+2, W+9, C)

    x = x_ref[0]                                         # (H, W, C) f32
    if has_pos:
        x = x + pos_ref[0]                               # pos_emb add folded in
    shortcut = x.reshape(H * W, C)

    # --- conv1x1 (bias=False) -> LayerNorm2d -> SiLU -------------------------------
    t = jnp.dot(shortcut, w1_ref[...], preferred_element_type=jnp.float32)
    t = _silu(_layernorm(t, g1_ref[...], b1_ref[...]))

    # --- depthwise 3x3 (padding=1, bias=False) via zero halo in VMEM scratch --------
    pad_ref[...] = jnp.zeros((H + 2, W + _HALO_L + 1, C), jnp.float32)
    # interior store: row offset 1 (major axis), column offset 8 (tile-aligned sublanes)
    pad_ref[1:H + 1, _HALO_L:_HALO_L + W, :] = t.reshape(H, W, C)
    acc = jnp.zeros((H, W, C), jnp.float32)
    for dy in range(3):
        for dx in range(3):
            tap = w2_ref[dy, dx:dx + 1, :]               # (1, C) per-channel tap
            win = pad_ref[dy:dy + H, _HALO_L - 1 + dx:_HALO_L - 1 + dx + W, :]
            acc = acc + win * tap
    u = _silu(_layernorm(acc.reshape(H * W, C), g2_ref[...], b2_ref[...]))

    # --- Squeeze-Excite: mean over HW -> fc1 -> SiLU -> fc2 -> sigmoid -> scale -----
    pooled = jnp.sum(u, axis=0, keepdims=True) * (1.0 / float(H * W))     # (1, C)
    se = jnp.dot(pooled, sw1_ref[...], preferred_element_type=jnp.float32) + sb1_ref[...]
    se = _silu(se)
    gate = jax.nn.sigmoid(
        jnp.dot(se, sw2_ref[...], preferred_element_type=jnp.float32) + sb2_ref[...])
    u = u * gate                                          # (H*W, C) * (1, C)

    # --- conv1x1 (bias=False) -> LayerNorm2d (no act) -> +shortcut -> SiLU ----------
    v = jnp.dot(u, w3_ref[...], preferred_element_type=jnp.float32)
    v = _layernorm(v, g3_ref[...], b3_ref[...])
    y = _silu(v + shortcut)                               # (H*W, C)

    if has_pool:
        # fused AdaptiveAvgPool2d: one (hq*wq, H*W) x (H*W, C) MXU matmul
        o_ref[0] = jnp.dot(pm_ref[...], y,
                           preferred_element_type=jnp.float32).reshape(hq, wq, C)
    else:
        o_ref[0] = y.reshape(H, W, C)


def _pool_matrix(H, W, hq, wq):
    # AdaptiveAvgPool2d with evenly dividing windows as a (hq*wq, H*W) matrix
    # (1/(kh*kw) scale folded in), so pooling is one matmul in the block epilogue.
    assert H % hq == 0 and W % wq == 0, "adaptive pool requires evenly dividing windows"
    kh, kw = H // hq, W // wq
    pm = np.zeros((hq * wq, H * W), np.float32)
    inv = 1.0 / float(kh * kw)
    for qy in range(hq):
        for qx in range(wq):
            for iy in range(kh):
                r = (qy * kh + iy) * W + qx * kw
                pm[qy * wq + qx, r:r + kw] = inv
    return jnp.asarray(pm)


def bottleneck_block(x_nhwc, p, *, pos=None, pool_hw=None):
    B, H, W, C = x_nhwc.shape
    rd = p["se_w1"].shape[1]
    has_pos = pos is not None
    has_pool = pool_hw is not None
    hq, wq = pool_hw if has_pool else (H, W)

    def resident(shape):
        return pl.BlockSpec(shape, lambda b, _n=len(shape): (0,) * _n)

    in_specs = [pl.BlockSpec((1, H, W, C), lambda b: (b, 0, 0, 0))]
    args = [x_nhwc]
    if has_pos:
        in_specs.append(pl.BlockSpec((1, H, W, C), lambda b: (0, 0, 0, 0)))
        args.append(pos.reshape(1, H, W, C))

    in_specs += [resident((C, C)), resident((1, C)), resident((1, C)),
                 resident((3, 3, C)), resident((1, C)), resident((1, C)),
                 resident((C, rd)), resident((1, rd)),
                 resident((rd, C)), resident((1, C)),
                 resident((C, C)), resident((1, C)), resident((1, C))]
    args += [p["w1"], p["ln1_g"].reshape(1, C), p["ln1_b"].reshape(1, C),
             p["w2"], p["ln2_g"].reshape(1, C), p["ln2_b"].reshape(1, C),
             p["se_w1"], p["se_b1"].reshape(1, rd),
             p["se_w2"], p["se_b2"].reshape(1, C),
             p["w3"], p["ln3_g"].reshape(1, C), p["ln3_b"].reshape(1, C)]

    if has_pool:
        in_specs.append(resident((hq * wq, H * W)))
        args.append(_pool_matrix(H, W, hq, wq))

    kernel = functools.partial(_bottleneck_kernel, H=H, W=W, C=C,
                               has_pos=has_pos, has_pool=has_pool, hq=hq, wq=wq)
    return pl.pallas_call(
        kernel,
        out_shape=jax.ShapeDtypeStruct((B, hq, wq, C), jnp.float32),
        grid=(B,),
        in_specs=in_specs,
        out_specs=pl.BlockSpec((1, hq, wq, C), lambda b: (b, 0, 0, 0)),
        scratch_shapes=[pltpu.VMEM((H + 2, W + _HALO_L + 1, C), jnp.float32)],
        compiler_params=pltpu.CompilerParams(
            dimension_semantics=("parallel",),        # v7x: 2 TCs split the batch
            vmem_limit_bytes=_VMEM_LIMIT),            # explicit budget (v7x: 64 MiB phys)
    )(*args)


# ----------------------------- fused readout MLP (Linear -> SiLU -> Linear) -----------------------------

def _readout_kernel(x_ref, w1_ref, b1_ref, w2_ref, b2_ref, o_ref):
    h = jnp.dot(x_ref[...], w1_ref[...], preferred_element_type=jnp.float32) + b1_ref[...]
    h = _silu(h)
    o_ref[...] = jnp.dot(h, w2_ref[...], preferred_element_type=jnp.float32) + b2_ref[...]


def _pick_tm(n, cap=512):
    # large row tiles to feed the 256-wide MXU on v6e/v7x; the full extent is always legal.
    if n <= cap:
        return n
    for t in (512, 384, 256, 128, 64):
        if n % t == 0:
            return t
    return n


def readout_mlp(x2d, w1, b1, w2, b2):
    N, D = x2d.shape
    Dh, Do = w1.shape[1], w2.shape[1]
    tm = _pick_tm(N)
    return pl.pallas_call(
        _readout_kernel,
        out_shape=jax.ShapeDtypeStruct((N, Do), jnp.float32),
        grid=(N // tm,),
        in_specs=[pl.BlockSpec((tm, D), lambda i: (i, 0)),
                  pl.BlockSpec((D, Dh), lambda i: (0, 0)),
                  pl.BlockSpec((1, Dh), lambda i: (0, 0)),
                  pl.BlockSpec((Dh, Do), lambda i: (0, 0)),
                  pl.BlockSpec((1, Do), lambda i: (0, 0))],
        out_specs=pl.BlockSpec((tm, Do), lambda i: (i, 0)),
        compiler_params=pltpu.CompilerParams(
            dimension_semantics=("parallel",),
            vmem_limit_bytes=_VMEM_LIMIT),
    )(x2d, w1, b1.reshape(1, Dh), w2, b2.reshape(1, Do))


# ----------------------------- model assembly -----------------------------

def cabstractor_forward(x, params, n_queries):
    B, L, D = x.shape
    hw = int(round(math.sqrt(L)))
    hq = int(round(math.sqrt(n_queries)))
    x = x.reshape(B, hw, hw, D)                             # 'b (h w) d -> b h w d' (NHWC)
    s1, s2 = params["s1"], params["s2"]
    # stage s1 (depth=3): pos-emb add folded into block 0, AdaptiveAvgPool folded into block 2
    x = bottleneck_block(x, s1[0], pos=params["pos_emb"])
    x = bottleneck_block(x, s1[1])
    x = bottleneck_block(x, s1[2], pool_hw=(hq, hq))
    # stage s2 (depth=3)
    for p in s2:
        x = bottleneck_block(x, p)
    x = x.reshape(B * hq * hq, D)                           # 'b h w d -> (b h w) d'
    x = readout_mlp(x, params["r1_w"], params["r1_b"], params["r2_w"], params["r2_b"])
    return x.reshape(B, hq * hq, -1)


def init_params(key, num_input_tokens, mm_hidden_size, output_hidden_size):
    # TODO(synk): trunc_normal_ truncation not reproduced exactly; plain scaled normal init used.
    D = mm_hidden_size
    rd = int(round(D * 0.25))   # SE reduce channels (se_ratio=0.25)
    keys = iter(jax.random.split(key, 128))

    def nrm(shape, scale):
        return scale * jax.random.normal(next(keys), shape, jnp.float32)

    def block_params():
        return {
            "w1": nrm((D, D), 1.0 / math.sqrt(D)),
            "ln1_g": 1.0 + nrm((D,), 0.1), "ln1_b": nrm((D,), 0.1),
            "w2": nrm((3, 3, D), 1.0 / 3.0),
            "ln2_g": 1.0 + nrm((D,), 0.1), "ln2_b": nrm((D,), 0.1),
            "se_w1": nrm((D, rd), 1.0 / math.sqrt(D)), "se_b1": nrm((rd,), 0.02),
            "se_w2": nrm((rd, D), 1.0 / math.sqrt(rd)), "se_b2": nrm((D,), 0.02),
            "w3": nrm((D, D), 1.0 / math.sqrt(D)),
            "ln3_g": 1.0 + nrm((D,), 0.1), "ln3_b": nrm((D,), 0.1),
        }

    return {
        "pos_emb": nrm((1, num_input_tokens, D), 0.02),
        "s1": [block_params() for _ in range(3)],
        "s2": [block_params() for _ in range(3)],
        "r1_w": nrm((D, output_hidden_size), 1.0 / math.sqrt(D)),
        "r1_b": nrm((output_hidden_size,), 0.02),
        "r2_w": nrm((output_hidden_size, output_hidden_size), 1.0 / math.sqrt(output_hidden_size)),
        "r2_b": nrm((output_hidden_size,), 0.02),
    }


if __name__ == "__main__":
    B = 2
    num_input_tokens = 64      # 8x8 token grid
    mm_hidden_size = 32
    output_hidden_size = 64
    n_queries = 16             # 4x4 queries (must be a square number)

    key = jax.random.PRNGKey(0)
    kx, kp = jax.random.split(key)
    x = jax.random.normal(kx, (B, num_input_tokens, mm_hidden_size), jnp.float32)
    params = init_params(kp, num_input_tokens, mm_hidden_size, output_hidden_size)

    out = cabstractor_forward(x, params, n_queries)
    out = jax.block_until_ready(out)
    assert out.shape == (B, n_queries, output_hidden_size), out.shape
    assert bool(jnp.all(jnp.isfinite(out)))
    print("KERNEL_OK")
</pallas_src>

<mosaic_0001>
module attributes {stable_mosaic.version = 11 : i64} {
  func.func @_bottleneck_kernel(%arg0: i32, %arg1: memref<1x8x8x32xf32, #tpu.memory_space<vmem>>, %arg2: memref<1x8x8x32xf32, #tpu.memory_space<vmem>>, %arg3: memref<32x32xf32, #tpu.memory_space<vmem>>, %arg4: memref<1x32xf32, #tpu.memory_space<vmem>>, %arg5: memref<1x32xf32, #tpu.memory_space<vmem>>, %arg6: memref<3x3x32xf32, #tpu.memory_space<vmem>>, %arg7: memref<1x32xf32, #tpu.memory_space<vmem>>, %arg8: memref<1x32xf32, #tpu.memory_space<vmem>>, %arg9: memref<32x8xf32, #tpu.memory_space<vmem>>, %arg10: memref<1x8xf32, #tpu.memory_space<vmem>>, %arg11: memref<8x32xf32, #tpu.memory_space<vmem>>, %arg12: memref<1x32xf32, #tpu.memory_space<vmem>>, %arg13: memref<32x32xf32, #tpu.memory_space<vmem>>, %arg14: memref<1x32xf32, #tpu.memory_space<vmem>>, %arg15: memref<1x32xf32, #tpu.memory_space<vmem>>, %arg16: memref<1x8x8x32xf32, #tpu.memory_space<vmem>>, %arg17: memref<10x17x32xf32, #tpu.memory_space<vmem>>) attributes {dimension_semantics = [#tpu.dimension_semantics<parallel>], iteration_bounds = array<i64: 2>, scalar_prefetch = 0 : i64, scratch_operands = 1 : i64, tpu.core_type = #tpu.core_type<tc>, window_params = [{transform_indices = @transform_0, window_bounds = array<i64: 1, 8, 8, 32>}, {pipeline_mode = #tpu.pipeline_mode<synchronous>, transform_indices = @transform_1, window_bounds = array<i64: 1, 8, 8, 32>}, {pipeline_mode = #tpu.pipeline_mode<synchronous>, transform_indices = @transform_2, window_bounds = array<i64: 32, 32>}, {pipeline_mode = #tpu.pipeline_mode<synchronous>, transform_indices = @transform_3, window_bounds = array<i64: 1, 32>}, {pipeline_mode = #tpu.pipeline_mode<synchronous>, transform_indices = @transform_4, window_bounds = array<i64: 1, 32>}, {pipeline_mode = #tpu.pipeline_mode<synchronous>, transform_indices = @transform_5, window_bounds = array<i64: 3, 3, 32>}, {pipeline_mode = #tpu.pipeline_mode<synchronous>, transform_indices = @transform_6, window_bounds = array<i64: 1, 32>}, {pipeline_mode = #tpu.pipeline_mode<synchronous>, transform_indices = @transform_7, window_bounds = array<i64: 1, 32>}, {pipeline_mode = #tpu.pipeline_mode<synchronous>, transform_indices = @transform_8, window_bounds = array<i64: 32, 8>}, {pipeline_mode = #tpu.pipeline_mode<synchronous>, transform_indices = @transform_9, window_bounds = array<i64: 1, 8>}, {pipeline_mode = #tpu.pipeline_mode<synchronous>, transform_indices = @transform_10, window_bounds = array<i64: 8, 32>}, {pipeline_mode = #tpu.pipeline_mode<synchronous>, transform_indices = @transform_11, window_bounds = array<i64: 1, 32>}, {pipeline_mode = #tpu.pipeline_mode<synchronous>, transform_indices = @transform_12, window_bounds = array<i64: 32, 32>}, {pipeline_mode = #tpu.pipeline_mode<synchronous>, transform_indices = @transform_13, window_bounds = array<i64: 1, 32>}, {pipeline_mode = #tpu.pipeline_mode<synchronous>, transform_indices = @transform_14, window_bounds = array<i64: 1, 32>}, {transform_indices = @transform_15, window_bounds = array<i64: 1, 8, 8, 32>}]} {
    %c0 = arith.constant 0 : index
    %c0_0 = arith.constant 0 : index
    %c0_1 = arith.constant 0 : index
    %c0_2 = arith.constant 0 : index
    %0 = vector.load %arg1[%c0, %c0_0, %c0_1, %c0_2] : memref<1x8x8x32xf32, #tpu.memory_space<vmem>>, vector<1x8x8x32xf32>
    %1 = vector.shape_cast %0 : vector<1x8x8x32xf32> to vector<8x8x32xf32>
    %c0_3 = arith.constant 0 : index
    %c0_4 = arith.constant 0 : index
    %c0_5 = arith.constant 0 : index
    %c0_6 = arith.constant 0 : index
    %2 = vector.load %arg2[%c0_3, %c0_4, %c0_5, %c0_6] : memref<1x8x8x32xf32, #tpu.memory_space<vmem>>, vector<1x8x8x32xf32>
    %3 = vector.shape_cast %2 : vector<1x8x8x32xf32> to vector<8x8x32xf32>
    %4 = arith.addf %1, %3 : vector<8x8x32xf32>
    %5 = vector.shape_cast %4 : vector<8x8x32xf32> to vector<64x32xf32>
    %c0_7 = arith.constant 0 : index
    %c0_8 = arith.constant 0 : index
    %6 = vector.load %arg3[%c0_7, %c0_8] : memref<32x32xf32, #tpu.memory_space<vmem>>, vector<32x32xf32>
    %cst = arith.constant dense<0.000000e+00> : vector<64x32xf32>
    %7 = tpu.matmul %5, %6, %cst {dimension_numbers = #tpu.dot_dimension_numbers<[1], [0], [0], [1], [0, 0, 1, 1], [], []>} : vector<64x32xf32>, vector<32x32xf32>, vector<64x32xf32> -> vector<64x32xf32>
    %c0_9 = arith.constant 0 : index
    %c0_10 = arith.constant 0 : index
    %8 = vector.load %arg4[%c0_9, %c0_10] : memref<1x32xf32, #tpu.memory_space<vmem>>, vector<1x32xf32>
    %c0_11 = arith.constant 0 : index
    %c0_12 = arith.constant 0 : index
    %9 = vector.load %arg5[%c0_11, %c0_12] : memref<1x32xf32, #tpu.memory_space<vmem>>, vector<1x32xf32>
    %cst_13 = arith.constant dense<0.000000e+00> : vector<64xf32>
    %10 = vector.multi_reduction <add>, %7, %cst_13 [1] : vector<64x32xf32> to vector<64xf32>
    %11 = vector.shape_cast %10 : vector<64xf32> to vector<64x1xf32>
    %cst_14 = arith.constant 3.200000e+01 : f32
    %12 = vector.broadcast %cst_14 : f32 to vector<64x1xf32>
    %13 = arith.divf %11, %12 : vector<64x1xf32>
    %14 = vector.broadcast %13 : vector<64x1xf32> to vector<64x32xf32>
    %15 = arith.subf %7, %14 : vector<64x32xf32>
    %16 = arith.mulf %15, %15 : vector<64x32xf32>
    %cst_15 = arith.constant dense<0.000000e+00> : vector<64xf32>
    %17 = vector.multi_reduction <add>, %16, %cst_15 [1] : vector<64x32xf32> to vector<64xf32>
    %18 = vector.shape_cast %17 : vector<64xf32> to vector<64x1xf32>
    %cst_16 = arith.constant 3.200000e+01 : f32
    %19 = vector.broadcast %cst_16 : f32 to vector<64x1xf32>
    %20 = arith.divf %18, %19 : vector<64x1xf32>
    %21 = vector.broadcast %13 : vector<64x1xf32> to vector<64x32xf32>
    %22 = arith.subf %7, %21 : vector<64x32xf32>
    %cst_17 = arith.constant 9.99999997E-7 : f32
    %23 = vector.broadcast %cst_17 : f32 to vector<64x1xf32>
    %24 = arith.addf %20, %23 : vector<64x1xf32>
    %25 = math.rsqrt %24 : vector<64x1xf32>
    %26 = vector.broadcast %25 : vector<64x1xf32> to vector<64x32xf32>
    %27 = arith.mulf %22, %26 : vector<64x32xf32>
    %28 = vector.broadcast %8 : vector<1x32xf32> to vector<64x32xf32>
    %29 = arith.mulf %27, %28 : vector<64x32xf32>
    %30 = vector.broadcast %9 : vector<1x32xf32> to vector<64x32xf32>
    %31 = arith.addf %29, %30 : vector<64x32xf32>
    %32 = arith.negf %31 : vector<64x32xf32>
    %33 = math.exp %32 : vector<64x32xf32>
    %cst_18 = arith.constant 1.000000e+00 : f32
    %34 = vector.broadcast %cst_18 : f32 to vector<64x32xf32>
    %35 = arith.addf %34, %33 : vector<64x32xf32>
    %36 = arith.divf %34, %35 : vector<64x32xf32>
    %37 = arith.mulf %31, %36 : vector<64x32xf32>
    %cst_19 = arith.constant 0.000000e+00 : f32
    %38 = vector.broadcast %cst_19 : f32 to vector<10x17x32xf32>
    %c0_20 = arith.constant 0 : index
    %c0_21 = arith.constant 0 : index
    %c0_22 = arith.constant 0 : index
    %39 = vector.load %arg17[%c0_20, %c0_21, %c0_22] : memref<10x17x32xf32, #tpu.memory_space<vmem>>, vector<10x17x32xf32>
    tpu.vector_store %arg17[%c0_20, %c0_21, %c0_22], %38 {strides = array<i32>} : memref<10x17x32xf32, #tpu.memory_space<vmem>>, vector<10x17x32xf32>,
    %40 = vector.shape_cast %37 : vector<64x32xf32> to vector<8x8x32xf32>
    %c1 = arith.constant 1 : index
    %c8 = arith.constant 8 : index
    %c0_23 = arith.constant 0 : index
    %41 = vector.load %arg17[%c1, %c8, %c0_23] : memref<10x17x32xf32, #tpu.memory_space<vmem>>, vector<8x8x32xf32>
    tpu.vector_store %arg17[%c1, %c8, %c0_23], %40 {strides = array<i32>} : memref<10x17x32xf32, #tpu.memory_space<vmem>>, vector<8x8x32xf32>,
    %cst_24 = arith.constant 0.000000e+00 : f32
    %42 = vector.broadcast %cst_24 : f32 to vector<8x8x32xf32>
    %c0_25 = arith.constant 0 : index
    %c0_26 = arith.constant 0 : index
    %c0_27 = arith.constant 0 : index
    %43 = vector.load %arg6[%c0_25, %c0_26, %c0_27] : memref<3x3x32xf32, #tpu.memory_space<vmem>>, vector<1x1x32xf32>
    %44 = vector.shape_cast %43 : vector<1x1x32xf32> to vector<1x32xf32>
    %c0_28 = arith.constant 0 : index
    %c7 = arith.constant 7 : index
    %c0_29 = arith.constant 0 : index
    %45 = vector.load %arg17[%c0_28, %c7, %c0_29] : memref<10x17x32xf32, #tpu.memory_space<vmem>>, vector<8x8x32xf32>
    %46 = vector.shape_cast %44 : vector<1x32xf32> to vector<1x1x32xf32>
    %47 = vector.broadcast %46 : vector<1x1x32xf32> to vector<8x8x32xf32>
    %48 = arith.mulf %45, %47 : vector<8x8x32xf32>
    %49 = arith.addf %42, %48 : vector<8x8x32xf32>
    %c0_30 = arith.constant 0 : index
    %c1_31 = arith.constant 1 : index
    %c0_32 = arith.constant 0 : index
    %50 = vector.load %arg6[%c0_30, %c1_31, %c0_32] : memref<3x3x32xf32, #tpu.memory_space<vmem>>, vector<1x1x32xf32>
    %51 = vector.shape_cast %50 : vector<1x1x32xf32> to vector<1x32xf32>
    %c0_33 = arith.constant 0 : index
    %c8_34 = arith.constant 8 : index
    %c0_35 = arith.constant 0 : index
    %52 = vector.load %arg17[%c0_33, %c8_34, %c0_35] : memref<10x17x32xf32, #tpu.memory_space<vmem>>, vector<8x8x32xf32>
    %53 = vector.shape_cast %51 : vector<1x32xf32> to vector<1x1x32xf32>
    %54 = vector.broadcast %53 : vector<1x1x32xf32> to vector<8x8x32xf32>
    %55 = arith.mulf %52, %54 : vector<8x8x32xf32>
    %56 = arith.addf %49, %55 : vector<8x8x32xf32>
    %c0_36 = arith.constant 0 : index
    %c2 = arith.constant 2 : index
    %c0_37 = arith.constant 0 : index
    %57 = vector.load %arg6[%c0_36, %c2, %c0_37] : memref<3x3x32xf32, #tpu.memory_space<vmem>>, vector<1x1x32xf32>
    %58 = vector.shape_cast %57 : vector<1x1x32xf32> to vector<1x32xf32>
    %c0_38 = arith.constant 0 : index
    %c9 = arith.constant 9 : index
    %c0_39 = arith.constant 0 : index
    %59 = vector.load %arg17[%c0_38, %c9, %c0_39] : memref<10x17x32xf32, #tpu.memory_space<vmem>>, vector<8x8x32xf32>
    %60 = vector.shape_cast %58 : vector<1x32xf32> to vector<1x1x32xf32>
    %61 = vector.broadcast %60 : vector<1x1x32xf32> to vector<8x8x32xf32>
    %62 = arith.mulf %59, %61 : vector<8x8x32xf32>
    %63 = arith.addf %56, %62 : vector<8x8x32xf32>
    %c1_40 = arith.constant 1 : index
    %c0_41 = arith.constant 0 : index
    %c0_42 = arith.constant 0 : index
    %64 = vector.load %arg6[%c1_40, %c0_41, %c0_42] : memref<3x3x32xf32, #tpu.memory_space<vmem>>, vector<1x1x32xf32>
    %65 = vector.shape_cast %64 : vector<1x1x32xf32> to vector<1x32xf32>
    %c1_43 = arith.constant 1 : index
    %c7_44 = arith.constant 7 : index
    %c0_45 = arith.constant 0 : index
    %66 = vector.load %arg17[%c1_43, %c7_44, %c0_45] : memref<10x17x32xf32, #tpu.memory_space<vmem>>, vector<8x8x32xf32>
    %67 = vector.shape_cast %65 : vector<1x32xf32> to vector<1x1x32xf32>
    %68 = vector.broadcast %67 : vector<1x1x32xf32> to vector<8x8x32xf32>
    %69 = arith.mulf %66, %68 : vector<8x8x32xf32>
    %70 = arith.addf %63, %69 : vector<8x8x32xf32>
    %c1_46 = arith.constant 1 : index
    %c1_47 = arith.constant 1 : index
    %c0_48 = arith.constant 0 : index
    %71 = vector.load %arg6[%c1_46, %c1_47, %c0_48] : memref<3x3x32xf32, #tpu.memory_space<vmem>>, vector<1x1x32xf32>
    %72 = vector.shape_cast %71 : vector<1x1x32xf32> to vector<1x32xf32>
    %c1_49 = arith.constant 1 : index
    %c8_50 = arith.constant 8 : index
    %c0_51 = arith.constant 0 : index
    %73 = vector.load %arg17[%c1_49, %c8_50, %c0_51] : memref<10x17x32xf32, #tpu.memory_space<vmem>>, vector<8x8x32xf32>
    %74 = vector.shape_cast %72 : vector<1x32xf32> to vector<1x1x32xf32>
    %75 = vector.broadcast %74 : vector<1x1x32xf32> to vector<8x8x32xf32>
    %76 = arith.mulf %73, %75 : vector<8x8x32xf32>
    %77 = arith.addf %70, %76 : vector<8x8x32xf32>
    %c1_52 = arith.constant 1 : index
    %c2_53 = arith.constant 2 : index
    %c0_54 = arith.constant 0 : index
    %78 = vector.load %arg6[%c1_52, %c2_53, %c0_54] : memref<3x3x32xf32, #tpu.memory_space<vmem>>, vector<1x1x32xf32>
    %79 = vector.shape_cast %78 : vector<1x1x32xf32> to vector<1x32xf32>
    %c1_55 = arith.constant 1 : index
    %c9_56 = arith.constant 9 : index
    %c0_57 = arith.constant 0 : index
    %80 = vector.load %arg17[%c1_55, %c9_56, %c0_57] : memref<10x17x32xf32, #tpu.memory_space<vmem>>, vector<8x8x32xf32>
    %81 = vector.shape_cast %79 : vector<1x32xf32> to vector<1x1x32xf32>
    %82 = vector.broadcast %81 : vector<1x1x32xf32> to vector<8x8x32xf32>
    %83 = arith.mulf %80, %82 : vector<8x8x32xf32>
    %84 = arith.addf %77, %83 : vector<8x8x32xf32>
    %c2_58 = arith.constant 2 : index
    %c0_59 = arith.constant 0 : index
    %c0_60 = arith.constant 0 : index
    %85 = vector.load %arg6[%c2_58, %c0_59, %c0_60] : memref<3x3x32xf32, #tpu.memory_space<vmem>>, vector<1x1x32xf32>
    %86 = vector.shape_cast %85 : vector<1x1x32xf32> to vector<1x32xf32>
    %c2_61 = arith.constant 2 : index
    %c7_62 = arith.constant 7 : index
    %c0_63 = arith.constant 0 : index
    %87 = vector.load %arg17[%c2_61, %c7_62, %c0_63] : memref<10x17x32xf32, #tpu.memory_space<vmem>>, vector<8x8x32xf32>
    %88 = vector.shape_cast %86 : vector<1x32xf32> to vector<1x1x32xf32>
    %89 = vector.broadcast %88 : vector<1x1x32xf32> to vector<8x8x32xf32>
    %90 = arith.mulf %87, %89 : vector<8x8x32xf32>
    %91 = arith.addf %84, %90 : vector<8x8x32xf32>
    %c2_64 = arith.constant 2 : index
    %c1_65 = arith.constant 1 : index
    %c0_66 = arith.constant 0 : index
    %92 = vector.load %arg6[%c2_64, %c1_65, %c0_66] : memref<3x3x32xf32, #tpu.memory_space<vmem>>, vector<1x1x32xf32>
    %93 = vector.shape_cast %92 : vector<1x1x32xf32> to vector<1x32xf32>
    %c2_67 = arith.constant 2 : index
    %c8_68 = arith.constant 8 : index
    %c0_69 = arith.constant 0 : index
    %94 = vector.load %arg17[%c2_67, %c8_68, %c0_69] : memref<10x17x32xf32, #tpu.memory_space<vmem>>, vector<8x8x32xf32>
    %95 = vector.shape_cast %93 : vector<1x32xf32> to vector<1x1x32xf32>
    %96 = vector.broadcast %95 : vector<1x1x32xf32> to vector<8x8x32xf32>
    %97 = arith.mulf %94, %96 : vector<8x8x32xf32>
    %98 = arith.addf %91, %97 : vector<8x8x32xf32>
    %c2_70 = arith.constant 2 : index
    %c2_71 = arith.constant 2 : index
    %c0_72 = arith.constant 0 : index
    %99 = vector.load %arg6[%c2_70, %c2_71, %c0_72] : memref<3x3x32xf32, #tpu.memory_space<vmem>>, vector<1x1x32xf32>
    %100 = vector.shape_cast %99 : vector<1x1x32xf32> to vector<1x32xf32>
    %c2_73 = arith.constant 2 : index
    %c9_74 = arith.constant 9 : index
    %c0_75 = arith.constant 0 : index
    %101 = vector.load %arg17[%c2_73, %c9_74, %c0_75] : memref<10x17x32xf32, #tpu.memory_space<vmem>>, vector<8x8x32xf32>
    %102 = vector.shape_cast %100 : vector<1x32xf32> to vector<1x1x32xf32>
    %103 = vector.broadcast %102 : vector<1x1x32xf32> to vector<8x8x32xf32>
    %104 = arith.mulf %101, %103 : vector<8x8x32xf32>
    %105 = arith.addf %98, %104 : vector<8x8x32xf32>
    %106 = vector.shape_cast %105 : vector<8x8x32xf32> to vector<64x32xf32>
    %c0_76 = arith.constant 0 : index
    %c0_77 = arith.constant 0 : index
    %107 = vector.load %arg7[%c0_76, %c0_77] : memref<1x32xf32, #tpu.memory_space<vmem>>, vector<1x32xf32>
    %c0_78 = arith.constant 0 : index
    %c0_79 = arith.constant 0 : index
    %108 = vector.load %arg8[%c0_78, %c0_79] : memref<1x32xf32, #tpu.memory_space<vmem>>, vector<1x32xf32>
    %cst_80 = arith.constant dense<0.000000e+00> : vector<64xf32>
    %109 = vector.multi_reduction <add>, %106, %cst_80 [1] : vector<64x32xf32> to vector<64xf32>
    %110 = vector.shape_cast %109 : vector<64xf32> to vector<64x1xf32>
    %cst_81 = arith.constant 3.200000e+01 : f32
    %111 = vector.broadcast %cst_81 : f32 to vector<64x1xf32>
    %112 = arith.divf %110, %111 : vector<64x1xf32>
    %113 = vector.broadcast %112 : vector<64x1xf32> to vector<64x32xf32>
    %114 = arith.subf %106, %113 : vector<64x32xf32>
    %115 = arith.mulf %114, %114 : vector<64x32xf32>
    %cst_82 = arith.constant dense<0.000000e+00> : vector<64xf32>
    %116 = vector.multi_reduction <add>, %115, %cst_82 [1] : vector<64x32xf32> to vector<64xf32>
    %117 = vector.shape_cast %116 : vector<64xf32> to vector<64x1xf32>
    %cst_83 = arith.constant 3.200000e+01 : f32
    %118 = vector.broadcast %cst_83 : f32 to vector<64x1xf32>
    %119 = arith.divf %117, %118 : vector<64x1xf32>
    %120 = vector.broadcast %112 : vector<64x1xf32> to vector<64x32xf32>
    %121 = arith.subf %106, %120 : vector<64x32xf32>
    %cst_84 = arith.constant 9.99999997E-7 : f32
    %122 = vector.broadcast %cst_84 : f32 to vector<64x1xf32>
    %123 = arith.addf %119, %122 : vector<64x1xf32>
    %124 = math.rsqrt %123 : vector<64x1xf32>
    %125 = vector.broadcast %124 : vector<64x1xf32> to vector<64x32xf32>
    %126 = arith.mulf %121, %125 : vector<64x32xf32>
    %127 = vector.broadcast %107 : vector<1x32xf32> to vector<64x32xf32>
    %128 = arith.mulf %126, %127 : vector<64x32xf32>
    %129 = vector.broadcast %108 : vector<1x32xf32> to vector<64x32xf32>
    %130 = arith.addf %128, %129 : vector<64x32xf32>
    %131 = arith.negf %130 : vector<64x32xf32>
    %132 = math.exp %131 : vector<64x32xf32>
    %cst_85 = arith.constant 1.000000e+00 : f32
    %133 = vector.broadcast %cst_85 : f32 to vector<64x32xf32>
    %134 = arith.addf %133, %132 : vector<64x32xf32>
    %135 = arith.divf %133, %134 : vector<64x32xf32>
    %136 = arith.mulf %130, %135 : vector<64x32xf32>
    %cst_86 = arith.constant dense<0.000000e+00> : vector<32xf32>
    %137 = vector.multi_reduction <add>, %136, %cst_86 [0] : vector<64x32xf32> to vector<32xf32>
    %138 = vector.shape_cast %137 : vector<32xf32> to vector<1x32xf32>
    %cst_87 = arith.constant 1.562500e-02 : f32
    %139 = vector.broadcast %cst_87 : f32 to vector<1x32xf32>
    %140 = arith.mulf %138, %139 : vector<1x32xf32>
    %c0_88 = arith.constant 0 : index
    %c0_89 = arith.constant 0 : index
    %141 = vector.load %arg9[%c0_88, %c0_89] : memref<32x8xf32, #tpu.memory_space<vmem>>, vector<32x8xf32>
    %cst_90 = arith.constant dense<0.000000e+00> : vector<1x8xf32>
    %142 = tpu.matmul %140, %141, %cst_90 {dimension_numbers = #tpu.dot_dimension_numbers<[1], [0], [0], [1], [0, 0, 1, 1], [], []>} : vector<1x32xf32>, vector<32x8xf32>, vector<1x8xf32> -> vector<1x8xf32>
    %c0_91 = arith.constant 0 : index
    %c0_92 = arith.constant 0 : index
    %143 = vector.load %arg10[%c0_91, %c0_92] : memref<1x8xf32, #tpu.memory_space<vmem>>, vector<1x8xf32>
    %144 = arith.addf %142, %143 : vector<1x8xf32>
    %145 = arith.negf %144 : vector<1x8xf32>
    %146 = math.exp %145 : vector<1x8xf32>
    %cst_93 = arith.constant 1.000000e+00 : f32
    %147 = vector.broadcast %cst_93 : f32 to vector<1x8xf32>
    %148 = arith.addf %147, %146 : vector<1x8xf32>
    %149 = arith.divf %147, %148 : vector<1x8xf32>
    %150 = arith.mulf %144, %149 : vector<1x8xf32>
    %c0_94 = arith.constant 0 : index
    %c0_95 = arith.constant 0 : index
    %151 = vector.load %arg11[%c0_94, %c0_95] : memref<8x32xf32, #tpu.memory_space<vmem>>, vector<8x32xf32>
    %cst_96 = arith.constant dense<0.000000e+00> : vector<1x32xf32>
    %152 = tpu.matmul %150, %151, %cst_96 {dimension_numbers = #tpu.dot_dimension_numbers<[1], [0], [0], [1], [0, 0, 1, 1], [], []>} : vector<1x8xf32>, vector<8x32xf32>, vector<1x32xf32> -> vector<1x32xf32>
    %c0_97 = arith.constant 0 : index
    %c0_98 = arith.constant 0 : index
    %153 = vector.load %arg12[%c0_97, %c0_98] : memref<1x32xf32, #tpu.memory_space<vmem>>, vector<1x32xf32>
    %154 = arith.addf %152, %153 : vector<1x32xf32>
    %155 = arith.negf %154 : vector<1x32xf32>
    %156 = math.exp %155 : vector<1x32xf32>
    %cst_99 = arith.constant 1.000000e+00 : f32
    %157 = vector.broadcast %cst_99 : f32 to vector<1x32xf32>
    %158 = arith.addf %157, %156 : vector<1x32xf32>
    %159 = arith.divf %157, %158 : vector<1x32xf32>
    %160 = vector.broadcast %159 : vector<1x32xf32> to vector<64x32xf32>
    %161 = arith.mulf %136, %160 : vector<64x32xf32>
    %c0_100 = arith.constant 0 : index
    %c0_101 = arith.constant 0 : index
    %162 = vector.load %arg13[%c0_100, %c0_101] : memref<32x32xf32, #tpu.memory_space<vmem>>, vector<32x32xf32>
    %cst_102 = arith.constant dense<0.000000e+00> : vector<64x32xf32>
    %163 = tpu.matmul %161, %162, %cst_102 {dimension_numbers = #tpu.dot_dimension_numbers<[1], [0], [0], [1], [0, 0, 1, 1], [], []>} : vector<64x32xf32>, vector<32x32xf32>, vector<64x32xf32> -> vector<64x32xf32>
    %c0_103 = arith.constant 0 : index
    %c0_104 = arith.constant 0 : index
    %164 = vector.load %arg14[%c0_103, %c0_104] : memref<1x32xf32, #tpu.memory_space<vmem>>, vector<1x32xf32>
    %c0_105 = arith.constant 0 : index
    %c0_106 = arith.constant 0 : index
    %165 = vector.load %arg15[%c0_105, %c0_106] : memref<1x32xf32, #tpu.memory_space<vmem>>, vector<1x32xf32>
    %cst_107 = arith.constant dense<0.000000e+00> : vector<64xf32>
    %166 = vector.multi_reduction <add>, %163, %cst_107 [1] : vector<64x32xf32> to vector<64xf32>
    %167 = vector.shape_cast %166 : vector<64xf32> to vector<64x1xf32>
    %cst_108 = arith.constant 3.200000e+01 : f32
    %168 = vector.broadcast %cst_108 : f32 to vector<64x1xf32>
    %169 = arith.divf %167, %168 : vector<64x1xf32>
    %170 = vector.broadcast %169 : vector<64x1xf32> to vector<64x32xf32>
    %171 = arith.subf %163, %170 : vector<64x32xf32>
    %172 = arith.mulf %171, %171 : vector<64x32xf32>
    %cst_109 = arith.constant dense<0.000000e+00> : vector<64xf32>
    %173 = vector.multi_reduction <add>, %172, %cst_109 [1] : vector<64x32xf32> to vector<64xf32>
    %174 = vector.shape_cast %173 : vector<64xf32> to vector<64x1xf32>
    %cst_110 = arith.constant 3.200000e+01 : f32
    %175 = vector.broadcast %cst_110 : f32 to vector<64x1xf32>
    %176 = arith.divf %174, %175 : vector<64x1xf32>
    %177 = vector.broadcast %169 : vector<64x1xf32> to vector<64x32xf32>
    %178 = arith.subf %163, %177 : vector<64x32xf32>
    %cst_111 = arith.constant 9.99999997E-7 : f32
    %179 = vector.broadcast %cst_111 : f32 to vector<64x1xf32>
    %180 = arith.addf %176, %179 : vector<64x1xf32>
    %181 = math.rsqrt %180 : vector<64x1xf32>
    %182 = vector.broadcast %181 : vector<64x1xf32> to vector<64x32xf32>
    %183 = arith.mulf %178, %182 : vector<64x32xf32>
    %184 = vector.broadcast %164 : vector<1x32xf32> to vector<64x32xf32>
    %185 = arith.mulf %183, %184 : vector<64x32xf32>
    %186 = vector.broadcast %165 : vector<1x32xf32> to vector<64x32xf32>
    %187 = arith.addf %185, %186 : vector<64x32xf32>
    %188 = arith.addf %187, %5 : vector<64x32xf32>
    %189 = arith.negf %188 : vector<64x32xf32>
    %190 = math.exp %189 : vector<64x32xf32>
    %cst_112 = arith.constant 1.000000e+00 : f32
    %191 = vector.broadcast %cst_112 : f32 to vector<64x32xf32>
    %192 = arith.addf %191, %190 : vector<64x32xf32>
    %193 = arith.divf %191, %192 : vector<64x32xf32>
    %194 = arith.mulf %188, %193 : vector<64x32xf32>
    %195 = vector.shape_cast %194 : vector<64x32xf32> to vector<8x8x32xf32>
    %c0_113 = arith.constant 0 : index
    %c0_114 = arith.constant 0 : index
    %c0_115 = arith.constant 0 : index
    %c0_116 = arith.constant 0 : index
    %196 = vector.load %arg16[%c0_113, %c0_114, %c0_115, %c0_116] : memref<1x8x8x32xf32, #tpu.memory_space<vmem>>, vector<1x8x8x32xf32>
    %197 = vector.shape_cast %196 : vector<1x8x8x32xf32> to vector<8x8x32xf32>
    %198 = vector.shape_cast %195 : vector<8x8x32xf32> to vector<1x8x8x32xf32>
    tpu.vector_store %arg16[%c0_113, %c0_114, %c0_115, %c0_116], %198 {strides = array<i32>} : memref<1x8x8x32xf32, #tpu.memory_space<vmem>>, vector<1x8x8x32xf32>,
    return
  }
  func.func @transform_0(%arg0: i32) -> (i32, i32, i32, i32) {
    %c0_i32 = arith.constant 0 : i32
    %c0_i32_0 = arith.constant 0 : i32
    %c0_i32_1 = arith.constant 0 : i32
    %c0_i32_2 = arith.constant 0 : i32
    return %arg0, %c0_i32, %c0_i32_0, %c0_i32_1 : i32, i32, i32, i32
  }
  func.func @transform_1(%arg0: i32) -> (i32, i32, i32, i32) {
    %c0_i32 = arith.constant 0 : i32
    %c0_i32_0 = arith.constant 0 : i32
    %c0_i32_1 = arith.constant 0 : i32
    %c0_i32_2 = arith.constant 0 : i32
    %c0_i32_3 = arith.constant 0 : i32
    return %c0_i32, %c0_i32_0, %c0_i32_1, %c0_i32_2 : i32, i32, i32, i32
  }
  func.func @transform_2(%arg0: i32) -> (i32, i32) {
    %c0_i32 = arith.constant 0 : i32
    %c0_i32_0 = arith.constant 0 : i32
    %c0_i32_1 = arith.constant 0 : i32
    return %c0_i32, %c0_i32_0 : i32, i32
  }
  func.func @transform_3(%arg0: i32) -> (i32, i32) {
    %c0_i32 = arith.constant 0 : i32
    %c0_i32_0 = arith.constant 0 : i32
    %c0_i32_1 = arith.constant 0 : i32
    return %c0_i32, %c0_i32_0 : i32, i32
  }
  func.func @transform_4(%arg0: i32) -> (i32, i32) {
    %c0_i32 = arith.constant 0 : i32
    %c0_i32_0 = arith.constant 0 : i32
    %c0_i32_1 = arith.constant 0 : i32
    return %c0_i32, %c0_i32_0 : i32, i32
  }
  func.func @transform_5(%arg0: i32) -> (i32, i32, i32) {
    %c0_i32 = arith.constant 0 : i32
    %c0_i32_0 = arith.constant 0 : i32
    %c0_i32_1 = arith.constant 0 : i32
    %c0_i32_2 = arith.constant 0 : i32
    return %c0_i32, %c0_i32_0, %c0_i32_1 : i32, i32, i32
  }
  func.func @transform_6(%arg0: i32) -> (i32, i32) {
    %c0_i32 = arith.constant 0 : i32
    %c0_i32_0 = arith.constant 0 : i32
    %c0_i32_1 = arith.constant 0 : i32
    return %c0_i32, %c0_i32_0 : i32, i32
  }
  func.func @transform_7(%arg0: i32) -> (i32, i32) {
    %c0_i32 = arith.constant 0 : i32
    %c0_i32_0 = arith.constant 0 : i32
    %c0_i32_1 = arith.constant 0 : i32
    return %c0_i32, %c0_i32_0 : i32, i32
  }
  func.func @transform_8(%arg0: i32) -> (i32, i32) {
    %c0_i32 = arith.constant 0 : i32
    %c0_i32_0 = arith.constant 0 : i32
    %c0_i32_1 = arith.constant 0 : i32
    return %c0_i32, %c0_i32_0 : i32, i32
  }
  func.func @transform_9(%arg0: i32) -> (i32, i32) {
    %c0_i32 = arith.constant 0 : i32
    %c0_i32_0 = arith.constant 0 : i32
    %c0_i32_1 = arith.constant 0 : i32
    return %c0_i32, %c0_i32_0 : i32, i32
  }
  func.func @transform_10(%arg0: i32) -> (i32, i32) {
    %c0_i32 = arith.constant 0 : i32
    %c0_i32_0 = arith.constant 0 : i32
    %c0_i32_1 = arith.constant 0 : i32
    return %c0_i32, %c0_i32_0 : i32, i32
  }
  func.func @transform_11(%arg0: i32) -> (i32, i32) {
    %c0_i32 = arith.constant 0 : i32
    %c0_i32_0 = arith.constant 0 : i32
    %c0_i32_1 = arith.constant 0 : i32
    return %c0_i32, %c0_i32_0 : i32, i32
  }
  func.func @transform_12(%arg0: i32) -> (i32, i32) {
    %c0_i32 = arith.constant 0 : i32
    %c0_i32_0 = arith.constant 0 : i32
    %c0_i32_1 = arith.constant 0 : i32
    return %c0_i32, %c0_i32_0 : i32, i32
  }
  func.func @transform_13(%arg0: i32) -> (i32, i32) {
    %c0_i32 = arith.constant 0 : i32
    %c0_i32_0 = arith.constant 0 : i32
    %c0_i32_1 = arith.constant 0 : i32
    return %c0_i32, %c0_i32_0 : i32, i32
  }
  func.func @transform_14(%arg0: i32) -> (i32, i32) {
    %c0_i32 = arith.constant 0 : i32
    %c0_i32_0 = arith.constant 0 : i32
    %c0_i32_1 = arith.constant 0 : i32
    return %c0_i32, %c0_i32_0 : i32, i32
  }
  func.func @transform_15(%arg0: i32) -> (i32, i32, i32, i32) {
    %c0_i32 = arith.constant 0 : i32
    %c0_i32_0 = arith.constant 0 : i32
    %c0_i32_1 = arith.constant 0 : i32
    %c0_i32_2 = arith.constant 0 : i32
    return %arg0, %c0_i32, %c0_i32_0, %c0_i32_1 : i32, i32, i32, i32
  }
}

</mosaic_0001>

<llo_original>
// kernel: tpu_custom_call.1
$region0: #{tpu_custom_call.1}
  #allocation0 [shape = 'u32[]', space=smem, size = 0x4, offset = 0x4, fixed_abs, tag = 'smem constant byte address 0x4 - core index']
  #allocation1 [shape = 'u32[144,128]{1,0:T(1,128)}', space=vmem, size = 0x12000, scoped, tag = 'internal scratch']
  #allocation2 [shape = 'f32[10,17,32]{2,1,0:T(8,128)}', space=vmem, size = 0x1e000, scoped, tag = 'scratch operand']
  %s0 = inlined_call_operand.hbm [shape: f32[2,8,8,32], index: 0, kind: input, shape index: {}]
  %s1 = inlined_call_operand.hbm [shape: f32[1,8,8,32], index: 1, kind: input, shape index: {}]
  %s2 = inlined_call_operand.vmem [shape: f32[32,32], index: 2, kind: input, shape index: {}]
  %s3 = inlined_call_operand.vmem [shape: f32[1,32], index: 3, kind: input, shape index: {}]
  %s4 = inlined_call_operand.vmem [shape: f32[1,32], index: 4, kind: input, shape index: {}]
  %s5 = inlined_call_operand.hbm [shape: f32[3,3,32], index: 5, kind: input, shape index: {}]
  %s6 = inlined_call_operand.hbm [shape: f32[1,32], index: 6, kind: input, shape index: {}]
  %s7 = inlined_call_operand.hbm [shape: f32[1,32], index: 7, kind: input, shape index: {}]
  %s8 = inlined_call_operand.vmem [shape: f32[32,8], index: 8, kind: input, shape index: {}]
  %s9 = inlined_call_operand.hbm [shape: f32[1,8], index: 9, kind: input, shape index: {}]
  %s10 = inlined_call_operand.vmem [shape: f32[8,32], index: 10, kind: input, shape index: {}]
  %s11 = inlined_call_operand.vmem [shape: f32[1,32], index: 11, kind: input, shape index: {}]
  %s12 = inlined_call_operand.vmem [shape: f32[32,32], index: 12, kind: input, shape index: {}]
  %s13 = inlined_call_operand.vmem [shape: f32[1,32], index: 13, kind: input, shape index: {}]
  %s14 = inlined_call_operand.vmem [shape: f32[1,32], index: 14, kind: input, shape index: {}]
  %s15 = inlined_call_operand.hbm [shape: f32[2,8,8,32], index: 15, kind: output, shape index: {}]
  %s16 = sld [smem:[#allocation0]]
  $region117: #{tpu_custom_call.1} parent=0
    _
  %s18 = ssub.s32 1, %s16
  %s19 = scalar_select 0, %s18, %s16
  $region1: #{tpu_custom_call.1} parent=0
    #allocation3 [shape = 'u8[65536]{0}', space=vmem, size = 0x10000, scoped, tag = 'input window, operand 0']
    #allocation4 [shape = 's32[2]{0}', space=sflag, size = 0x8, scoped, tag = 'scoped memory for tpu_custom_call.1']
    #allocation5 [shape = 's32[2]{0}', space=sflag, size = 0x8, scoped, tag = 'scoped memory for tpu_custom_call.1']
    #allocation6 [shape = 'u8[32768]{0}', space=vmem, size = 0x8000, scoped, tag = 'input window, operand 1, single buffered']
    #allocation7 [shape = 's32[1]{0}', space=sflag, size = 0x4, scoped, tag = 'scoped memory for tpu_custom_call.1']
    #allocation8 [shape = 'u8[6144]{0}', space=vmem, size = 0x1800, scoped, tag = 'input window, operand 5, single buffered']
    #allocation9 [shape = 'u8[512]{0}', space=vmem, size = 0x400, scoped, tag = 'input window, operand 6, single buffered']
    #allocation10 [shape = 's32[1]{0}', space=sflag, size = 0x4, scoped, tag = 'scoped memory for tpu_custom_call.1']
    #allocation11 [shape = 'u8[512]{0}', space=vmem, size = 0x400, scoped, tag = 'input window, operand 7, single buffered']
    #allocation12 [shape = 'u8[512]{0}', space=vmem, size = 0x400, scoped, tag = 'input window, operand 9, single buffered']
    #allocation13 [shape = 's32[1]{0}', space=sflag, size = 0x4, scoped, tag = 'scoped memory for tpu_custom_call.1']
    #allocation14 [shape = 'u8[65536]{0}', space=vmem, size = 0x10000, scoped, tag = 'output window, operand 0']
    %20 = vsyncpa [#allocation4], 0
    %s21 = scalar_lea.sflag [#allocation4], 1
    %22 = vsyncpa %s21, 0
    %23 = vsyncpa [#allocation7], 0
    %24 = vsyncpa [#allocation10], 0
    %25 = vsyncpa [#allocation13], 0
    %26 = vsyncpa [#allocation5], 0
    %s27 = scalar_lea.sflag [#allocation5], 1
    %28 = vsyncpa %s27, 0
    loop: start=0, step=1, limit=4
    $region2: #{tpu_custom_call.1} parent=1 // loop_pre_header
      _
    $region3: #{tpu_custom_call.1} parent=1 // loop_header
      %s30 = sphi 0, %s34
      %p31 = scmp.ge.s32.totalorder %s30, 4
      %s40 = sphi 0, %s42
      %s43 = sphi 0, %s40
      %s44 = sphi 0, %s43
      %s60 = sphi 0, %s44
      %s64 = sphi 0, %s64
      %s66 = sphi 0, %s64
      %s67 = sphi 0, %s66
      %s81 = sphi 0, %s67
      %s85 = sphi 0, %s85
      %s87 = sphi 0, %s85
      %s88 = sphi 0, %s87
      %s102 = sphi 0, %s88
      %s106 = sphi 0, %s106
      %s108 = sphi 0, %s106
      %s109 = sphi 0, %s108
      %s123 = sphi 0, %s109
      %s127 = sphi 0, %s127
      %s129 = sphi 0, %s127
      %s130 = sphi 0, %s129
      %s144 = sphi 0, %s130
      %s148 = sphi 0, %s148
      %s150 = sphi 0, %s148
      %s151 = sphi 0, %s150
      %s165 = sphi 0, %s151
      %s169 = sphi 0, %s169
      %s171 = sphi 0, %s169
      %s172 = sphi 0, %s171
      %s186 = sphi 0, %s172
      %s190 = sphi 0, %s190
      %s192 = sphi 0, %s190
      %s193 = sphi 0, %s192
      %s207 = sphi 0, %s193
      %s211 = sphi 0, %s211
      %s213 = sphi 0, %s211
      %s214 = sphi 0, %s213
      %s228 = sphi 0, %s214
      %s232 = sphi 0, %s232
      %s234 = sphi 0, %s232
      %s235 = sphi 0, %s234
      %s249 = sphi 0, %s235
      %s253 = sphi 0, %s253
      %s255 = sphi 0, %s253
      %s256 = sphi 0, %s255
      %s270 = sphi 0, %s256
      %s274 = sphi 0, %s274
      %s276 = sphi 0, %s274
      %s277 = sphi 0, %s276
      %s291 = sphi 0, %s277
      %s295 = sphi 0, %s295
      %s297 = sphi 0, %s295
      %s298 = sphi 0, %s297
      %s312 = sphi 0, %s298
      %s316 = sphi 0, %s316
      %s318 = sphi 0, %s316
      %s319 = sphi 0, %s318
      %s333 = sphi 0, %s319
      %s337 = sphi 0, %s337
      %s339 = sphi 0, %s337
      %s340 = sphi 0, %s339
      %s354 = sphi 0, %s340
      %s360 = sphi 0, %s362
      %s363 = sphi 0, %s360
      %s364 = sphi 0, %s363
      %s380 = sphi 0, %s364
    $region4: #{tpu_custom_call.1} parent=1 // loop_header_branch
      %33 = sbr.rel (%p31) target = $region8
    $region5: #{tpu_custom_call.1} parent=1 // loop_body
      %s35 = ssub.s32 %s30, 1
      %s36 = ssub.s32 %s30, 2
      %s37 = sadd.s32 %s30, 1
      %s38 = ssub.s32 %s30, %s37
      %p39 = scmp.eq.s32.totalorder %s38, 0
      %s41 = sadd.s32 %s40, 1
      %s42 = scalar_select %p39, %s40, %s41
      %p45 = pneg %p39
      %p46 = scmp.eq.s32.totalorder %s30, 1
      %p47 = por %p45, %p46
      %p48 = scmp.ne.s32.totalorder %s40, %s43
      %p49 = scmp.eq.s32.totalorder %s30, 0
      %p50 = por %p48, %p49
      %p51 = scmp.ne.s32.totalorder %s40, %s43
      %p52 = scmp.eq.s32.totalorder %s35, 1
      %p53 = por %p51, %p52
      %p54 = scmp.ne.s32.totalorder %s43, %s44
      %p55 = scmp.eq.s32.totalorder %s35, 0
      %p56 = por %p54, %p55
      %p57 = scmp.ne.s32.totalorder %s43, %s44
      %p58 = scmp.eq.s32.totalorder %s36, 1
      %p59 = por %p57, %p58
      %p61 = scmp.ne.s32.totalorder %s44, %s60
      %p62 = scmp.eq.s32.totalorder %s36, 0
      %p63 = por %p61, %p62
      %s65 = sadd.s32 %s64, 1
      %p68 = scmp.eq.s32.totalorder %s30, 1
      %p69 = scmp.ne.s32.totalorder %s64, %s66
      %p70 = scmp.eq.s32.totalorder %s30, 0
      %p71 = por %p69, %p70
      %p72 = scmp.ne.s32.totalorder %s64, %s66
      %p73 = scmp.eq.s32.totalorder %s35, 1
      %p74 = por %p72, %p73
      %p75 = scmp.ne.s32.totalorder %s66, %s67
      %p76 = scmp.eq.s32.totalorder %s35, 0
      %p77 = por %p75, %p76
      %p78 = scmp.ne.s32.totalorder %s66, %s67
      %p79 = scmp.eq.s32.totalorder %s36, 1
      %p80 = por %p78, %p79
      %p82 = scmp.ne.s32.totalorder %s67, %s81
      %p83 = scmp.eq.s32.totalorder %s36, 0
      %p84 = por %p82, %p83
      %s86 = sadd.s32 %s85, 1
      %p89 = scmp.eq.s32.totalorder %s30, 1
      %p90 = scmp.ne.s32.totalorder %s85, %s87
      %p91 = scmp.eq.s32.totalorder %s30, 0
      %p92 = por %p90, %p91
      %p93 = scmp.ne.s32.totalorder %s85, %s87
      %p94 = scmp.eq.s32.totalorder %s35, 1
      %p95 = por %p93, %p94
      %p96 = scmp.ne.s32.totalorder %s87, %s88
      %p97 = scmp.eq.s32.totalorder %s35, 0
      %p98 = por %p96, %p97
      %p99 = scmp.ne.s32.totalorder %s87, %s88
      %p100 = scmp.eq.s32.totalorder %s36, 1
      %p101 = por %p99, %p100
      %p103 = scmp.ne.s32.totalorder %s88, %s102
      %p104 = scmp.eq.s32.totalorder %s36, 0
      %p105 = por %p103, %p104
      %s107 = sadd.s32 %s106, 1
      %p110 = scmp.eq.s32.totalorder %s30, 1
      %p111 = scmp.ne.s32.totalorder %s106, %s108
      %p112 = scmp.eq.s32.totalorder %s30, 0
      %p113 = por %p111, %p112
      %p114 = scmp.ne.s32.totalorder %s106, %s108
      %p115 = scmp.eq.s32.totalorder %s35, 1
      %p116 = por %p114, %p115
      %p117 = scmp.ne.s32.totalorder %s108, %s109
      %p118 = scmp.eq.s32.totalorder %s35, 0
      %p119 = por %p117, %p118
      %p120 = scmp.ne.s32.totalorder %s108, %s109
      %p121 = scmp.eq.s32.totalorder %s36, 1
      %p122 = por %p120, %p121
      %p124 = scmp.ne.s32.totalorder %s109, %s123
      %p125 = scmp.eq.s32.totalorder %s36, 0
      %p126 = por %p124, %p125
      %s128 = sadd.s32 %s127, 1
      %p131 = scmp.eq.s32.totalorder %s30, 1
      %p132 = scmp.ne.s32.totalorder %s127, %s129
      %p133 = scmp.eq.s32.totalorder %s30, 0
      %p134 = por %p132, %p133
      %p135 = scmp.ne.s32.totalorder %s127, %s129
      %p136 = scmp.eq.s32.totalorder %s35, 1
      %p137 = por %p135, %p136
      %p138 = scmp.ne.s32.totalorder %s129, %s130
      %p139 = scmp.eq.s32.totalorder %s35, 0
      %p140 = por %p138, %p139
      %p141 = scmp.ne.s32.totalorder %s129, %s130
      %p142 = scmp.eq.s32.totalorder %s36, 1
      %p143 = por %p141, %p142
      %p145 = scmp.ne.s32.totalorder %s130, %s144
      %p146 = scmp.eq.s32.totalorder %s36, 0
      %p147 = por %p145, %p146
      %s149 = sadd.s32 %s148, 1
      %p152 = scmp.eq.s32.totalorder %s30, 1
      %p153 = scmp.ne.s32.totalorder %s148, %s150
      %p154 = scmp.eq.s32.totalorder %s30, 0
      %p155 = por %p153, %p154
      %p156 = scmp.ne.s32.totalorder %s148, %s150
      %p157 = scmp.eq.s32.totalorder %s35, 1
      %p158 = por %p156, %p157
      %p159 = scmp.ne.s32.totalorder %s150, %s151
      %p160 = scmp.eq.s32.totalorder %s35, 0
      %p161 = por %p159, %p160
      %p162 = scmp.ne.s32.totalorder %s150, %s151
      %p163 = scmp.eq.s32.totalorder %s36, 1
      %p164 = por %p162, %p163
      %p166 = scmp.ne.s32.totalorder %s151, %s165
      %p167 = scmp.eq.s32.totalorder %s36, 0
      %p168 = por %p166, %p167
      %s170 = sadd.s32 %s169, 1
      %p173 = scmp.eq.s32.totalorder %s30, 1
      %p174 = scmp.ne.s32.totalorder %s169, %s171
      %p175 = scmp.eq.s32.totalorder %s30, 0
      %p176 = por %p174, %p175
      %p177 = scmp.ne.s32.totalorder %s169, %s171
      %p178 = scmp.eq.s32.totalorder %s35, 1
      %p179 = por %p177, %p178
      %p180 = scmp.ne.s32.totalorder %s171, %s172
      %p181 = scmp.eq.s32.totalorder %s35, 0
      %p182 = por %p180, %p181
      %p183 = scmp.ne.s32.totalorder %s171, %s172
      %p184 = scmp.eq.s32.totalorder %s36, 1
      %p185 = por %p183, %p184
      %p187 = scmp.ne.s32.totalorder %s172, %s186
      %p188 = scmp.eq.s32.totalorder %s36, 0
      %p189 = por %p187, %p188
      %s191 = sadd.s32 %s190, 1
      %p194 = scmp.eq.s32.totalorder %s30, 1
      %p195 = scmp.ne.s32.totalorder %s190, %s192
      %p196 = scmp.eq.s32.totalorder %s30, 0
      %p197 = por %p195, %p196
      %p198 = scmp.ne.s32.totalorder %s190, %s192
      %p199 = scmp.eq.s32.totalorder %s35, 1
      %p200 = por %p198, %p199
      %p201 = scmp.ne.s32.totalorder %s192, %s193
      %p202 = scmp.eq.s32.totalorder %s35, 0
      %p203 = por %p201, %p202
      %p204 = scmp.ne.s32.totalorder %s192, %s193
      %p205 = scmp.eq.s32.totalorder %s36, 1
      %p206 = por %p204, %p205
      %p208 = scmp.ne.s32.totalorder %s193, %s207
      %p209 = scmp.eq.s32.totalorder %s36, 0
      %p210 = por %p208, %p209
      %s212 = sadd.s32 %s211, 1
      %p215 = scmp.eq.s32.totalorder %s30, 1
      %p216 = scmp.ne.s32.totalorder %s211, %s213
      %p217 = scmp.eq.s32.totalorder %s30, 0
      %p218 = por %p216, %p217
      %p219 = scmp.ne.s32.totalorder %s211, %s213
      %p220 = scmp.eq.s32.totalorder %s35, 1
      %p221 = por %p219, %p220
      %p222 = scmp.ne.s32.totalorder %s213, %s214
      %p223 = scmp.eq.s32.totalorder %s35, 0
      %p224 = por %p222, %p223
      %p225 = scmp.ne.s32.totalorder %s213, %s214
      %p226 = scmp.eq.s32.totalorder %s36, 1
      %p227 = por %p225, %p226
      %p229 = scmp.ne.s32.totalorder %s214, %s228
      %p230 = scmp.eq.s32.totalorder %s36, 0
      %p231 = por %p229, %p230
      %s233 = sadd.s32 %s232, 1
      %p236 = scmp.eq.s32.totalorder %s30, 1
      %p237 = scmp.ne.s32.totalorder %s232, %s234
      %p238 = scmp.eq.s32.totalorder %s30, 0
      %p239 = por %p237, %p238
      %p240 = scmp.ne.s32.totalorder %s232, %s234
      %p241 = scmp.eq.s32.totalorder %s35, 1
      %p242 = por %p240, %p241
      %p243 = scmp.ne.s32.totalorder %s234, %s235
      %p244 = scmp.eq.s32.totalorder %s35, 0
      %p245 = por %p243, %p244
      %p246 = scmp.ne.s32.totalorder %s234, %s235
      %p247 = scmp.eq.s32.totalorder %s36, 1
      %p248 = por %p246, %p247
      %p250 = scmp.ne.s32.totalorder %s235, %s249
      %p251 = scmp.eq.s32.totalorder %s36, 0
      %p252 = por %p250, %p251
      %s254 = sadd.s32 %s253, 1
      %p257 = scmp.eq.s32.totalorder %s30, 1
      %p258 = scmp.ne.s32.totalorder %s253, %s255
      %p259 = scmp.eq.s32.totalorder %s30, 0
      %p260 = por %p258, %p259
      %p261 = scmp.ne.s32.totalorder %s253, %s255
      %p262 = scmp.eq.s32.totalorder %s35, 1
      %p263 = por %p261, %p262
      %p264 = scmp.ne.s32.totalorder %s255, %s256
      %p265 = scmp.eq.s32.totalorder %s35, 0
      %p266 = por %p264, %p265
      %p267 = scmp.ne.s32.totalorder %s255, %s256
      %p268 = scmp.eq.s32.totalorder %s36, 1
      %p269 = por %p267, %p268
      %p271 = scmp.ne.s32.totalorder %s256, %s270
      %p272 = scmp.eq.s32.totalorder %s36, 0
      %p273 = por %p271, %p272
      %s275 = sadd.s32 %s274, 1
      %p278 = scmp.eq.s32.totalorder %s30, 1
      %p279 = scmp.ne.s32.totalorder %s274, %s276
      %p280 = scmp.eq.s32.totalorder %s30, 0
      %p281 = por %p279, %p280
      %p282 = scmp.ne.s32.totalorder %s274, %s276
      %p283 = scmp.eq.s32.totalorder %s35, 1
      %p284 = por %p282, %p283
      %p285 = scmp.ne.s32.totalorder %s276, %s277
      %p286 = scmp.eq.s32.totalorder %s35, 0
      %p287 = por %p285, %p286
      %p288 = scmp.ne.s32.totalorder %s276, %s277
      %p289 = scmp.eq.s32.totalorder %s36, 1
      %p290 = por %p288, %p289
      %p292 = scmp.ne.s32.totalorder %s277, %s291
      %p293 = scmp.eq.s32.totalorder %s36, 0
      %p294 = por %p292, %p293
      %s296 = sadd.s32 %s295, 1
      %p299 = scmp.eq.s32.totalorder %s30, 1
      %p300 = scmp.ne.s32.totalorder %s295, %s297
      %p301 = scmp.eq.s32.totalorder %s30, 0
      %p302 = por %p300, %p301
      %p303 = scmp.ne.s32.totalorder %s295, %s297
      %p304 = scmp.eq.s32.totalorder %s35, 1
      %p305 = por %p303, %p304
      %p306 = scmp.ne.s32.totalorder %s297, %s298
      %p307 = scmp.eq.s32.totalorder %s35, 0
      %p308 = por %p306, %p307
      %p309 = scmp.ne.s32.totalorder %s297, %s298
      %p310 = scmp.eq.s32.totalorder %s36, 1
      %p311 = por %p309, %p310
      %p313 = scmp.ne.s32.totalorder %s298, %s312
      %p314 = scmp.eq.s32.totalorder %s36, 0
      %p315 = por %p313, %p314
      %s317 = sadd.s32 %s316, 1
      %p320 = scmp.eq.s32.totalorder %s30, 1
      %p321 = scmp.ne.s32.totalorder %s316, %s318
      %p322 = scmp.eq.s32.totalorder %s30, 0
      %p323 = por %p321, %p322
      %p324 = scmp.ne.s32.totalorder %s316, %s318
      %p325 = scmp.eq.s32.totalorder %s35, 1
      %p326 = por %p324, %p325
      %p327 = scmp.ne.s32.totalorder %s318, %s319
      %p328 = scmp.eq.s32.totalorder %s35, 0
      %p329 = por %p327, %p328
      %p330 = scmp.ne.s32.totalorder %s318, %s319
      %p331 = scmp.eq.s32.totalorder %s36, 1
      %p332 = por %p330, %p331
      %p334 = scmp.ne.s32.totalorder %s319, %s333
      %p335 = scmp.eq.s32.totalorder %s36, 0
      %p336 = por %p334, %p335
      %s338 = sadd.s32 %s337, 1
      %p341 = scmp.eq.s32.totalorder %s30, 1
      %p342 = scmp.ne.s32.totalorder %s337, %s339
      %p343 = scmp.eq.s32.totalorder %s30, 0
      %p344 = por %p342, %p343
      %p345 = scmp.ne.s32.totalorder %s337, %s339
      %p346 = scmp.eq.s32.totalorder %s35, 1
      %p347 = por %p345, %p346
      %p348 = scmp.ne.s32.totalorder %s339, %s340
      %p349 = scmp.eq.s32.totalorder %s35, 0
      %p350 = por %p348, %p349
      %p351 = scmp.ne.s32.totalorder %s339, %s340
      %p352 = scmp.eq.s32.totalorder %s36, 1
      %p353 = por %p351, %p352
      %p355 = scmp.ne.s32.totalorder %s340, %s354
      %p356 = scmp.eq.s32.totalorder %s36, 0
      %p357 = por %p355, %p356
      %s358 = ssub.s32 %s30, %s37
      %p359 = scmp.eq.s32.totalorder %s358, 0
      %s361 = sadd.s32 %s360, 1
      %s362 = scalar_select %p359, %s360, %s361
      %p365 = pneg %p359
      %p366 = scmp.eq.s32.totalorder %s30, 1
      %p367 = por %p365, %p366
      %p368 = scmp.ne.s32.totalorder %s360, %s363
      %p369 = scmp.eq.s32.totalorder %s30, 0
      %p370 = por %p368, %p369
      %p371 = scmp.ne.s32.totalorder %s360, %s363
      %p372 = scmp.eq.s32.totalorder %s35, 1
      %p373 = por %p371, %p372
      %p374 = scmp.ne.s32.totalorder %s363, %s364
      %p375 = scmp.eq.s32.totalorder %s35, 0
      %p376 = por %p374, %p375
      %p377 = scmp.ne.s32.totalorder %s363, %s364
      %p378 = scmp.eq.s32.totalorder %s36, 1
      %p379 = por %p377, %p378
      %p381 = scmp.ne.s32.totalorder %s364, %s380
      %p382 = scmp.eq.s32.totalorder %s36, 0
      %p383 = por %p381, %p382
      %p384 = scmp.le.s32.totalorder 1, %s30
      %p385 = scmp.lt.s32.totalorder %s30, 3
      %p386 = pnand %p384, %p385
      %p387 = pneg %p386
      // Predicated region
      $region9: #{tpu_custom_call.1} parent=5 // pred_check
        _
      $region10: #{tpu_custom_call.1} parent=5 // pred_check_branch
        %389 = sbr.rel (%p386) target = $region12
      $region11: #{tpu_custom_call.1} parent=5 // pred_region
        %s390 = ssub.s32 %s30, 1
        // Predicated region
        $region13: #{tpu_custom_call.1} parent=11 // pred_check
          %p391 = pneg %p77
        $region14: #{tpu_custom_call.1} parent=11 // pred_check_branch
          %393 = sbr.rel (%p391) target = $region16
        $region15: #{tpu_custom_call.1} parent=11 // pred_region
          %s395 = ssub.s32 1024, 1024
          %396 = vsyncadd [#allocation7], %s395
          %s397 = sshll.u32 [#allocation6], 4
          %s398 = int_to_ptr.vmem [resolvable:$true] %s397
          %403 = dma.hbm_to_vmem [thread:$0]  %s1, 1024, %s398, [#allocation7], 128, 128, 8
        $region16: #{tpu_custom_call.1} parent=11 // pred_fallthru
          _
        // Predicated region
        $region17: #{tpu_custom_call.1} parent=11 // pred_check
          %p404 = pneg %p98
        $region18: #{tpu_custom_call.1} parent=11 // pred_check_branch
          %406 = sbr.rel (%p404) target = $region20
        $region19: #{tpu_custom_call.1} parent=11 // pred_region
          _
        $region20: #{tpu_custom_call.1} parent=11 // pred_fallthru
          _
        // Predicated region
        $region21: #{tpu_custom_call.1} parent=11 // pred_check
          %p407 = pneg %p119
        $region22: #{tpu_custom_call.1} parent=11 // pred_check_branch
          %409 = sbr.rel (%p407) target = $region24
        $region23: #{tpu_custom_call.1} parent=11 // pred_region
          _
        $region24: #{tpu_custom_call.1} parent=11 // pred_fallthru
          _
        // Predicated region
        $region25: #{tpu_custom_call.1} parent=11 // pred_check
          %p410 = pneg %p140
        $region26: #{tpu_custom_call.1} parent=11 // pred_check_branch
          %412 = sbr.rel (%p410) target = $region28
        $region27: #{tpu_custom_call.1} parent=11 // pred_region
          _
        $region28: #{tpu_custom_call.1} parent=11 // pred_fallthru
          _
        // Predicated region
        $region29: #{tpu_custom_call.1} parent=11 // pred_check
          %p413 = pneg %p161
        $region30: #{tpu_custom_call.1} parent=11 // pred_check_branch
          %415 = sbr.rel (%p413) target = $region32
        $region31: #{tpu_custom_call.1} parent=11 // pred_region
          %s417 = ssub.s32 192, 192
          %418 = vsyncadd [#allocation7], %s417
          %s419 = sshll.u32 [#allocation8], 4
          %s420 = int_to_ptr.vmem [resolvable:$true] %s419
          %425 = dma.hbm_to_vmem [thread:$0]  %s5, 192, %s420, [#allocation7], 64, 64, 4
        $region32: #{tpu_custom_call.1} parent=11 // pred_fallthru
          _
        // Predicated region
        $region33: #{tpu_custom_call.1} parent=11 // pred_check
          %p426 = pneg %p182
        $region34: #{tpu_custom_call.1} parent=11 // pred_check_branch
          %428 = sbr.rel (%p426) target = $region36
        $region35: #{tpu_custom_call.1} parent=11 // pred_region
          %s430 = ssub.s32 16, 16
          %431 = vsyncadd [#allocation10], %s430
          %s433 = sshll.u32 [#allocation9], 4
          %s434 = int_to_ptr.vmem [resolvable:$true] %s433
          %436 = dma.hbm_to_vmem [thread:$0]  %s6, 16, %s434, [#allocation10]
        $region36: #{tpu_custom_call.1} parent=11 // pred_fallthru
          _
        // Predicated region
        $region37: #{tpu_custom_call.1} parent=11 // pred_check
          %p437 = pneg %p203
        $region38: #{tpu_custom_call.1} parent=11 // pred_check_branch
          %439 = sbr.rel (%p437) target = $region40
        $region39: #{tpu_custom_call.1} parent=11 // pred_region
          %s441 = ssub.s32 16, 16
          %442 = vsyncadd [#allocation10], %s441
          %s444 = sshll.u32 [#allocation11], 4
          %s445 = int_to_ptr.vmem [resolvable:$true] %s444
          %447 = dma.hbm_to_vmem [thread:$0]  %s7, 16, %s445, [#allocation10]
        $region40: #{tpu_custom_call.1} parent=11 // pred_fallthru
          _
        // Predicated region
        $region41: #{tpu_custom_call.1} parent=11 // pred_check
          %p448 = pneg %p224
        $region42: #{tpu_custom_call.1} parent=11 // pred_check_branch
          %450 = sbr.rel (%p448) target = $region44
        $region43: #{tpu_custom_call.1} parent=11 // pred_region
          _
        $region44: #{tpu_custom_call.1} parent=11 // pred_fallthru
          _
        // Predicated region
        $region45: #{tpu_custom_call.1} parent=11 // pred_check
          %p451 = pneg %p245
        $region46: #{tpu_custom_call.1} parent=11 // pred_check_branch
          %453 = sbr.rel (%p451) target = $region48
        $region47: #{tpu_custom_call.1} parent=11 // pred_region
          %s455 = ssub.s32 16, 16
          %456 = vsyncadd [#allocation13], %s455
          %s458 = sshll.u32 [#allocation12], 4
          %s459 = int_to_ptr.vmem [resolvable:$true] %s458
          %461 = dma.hbm_to_vmem [thread:$0]  %s9, 16, %s459, [#allocation13]
        $region48: #{tpu_custom_call.1} parent=11 // pred_fallthru
          _
        // Predicated region
        $region49: #{tpu_custom_call.1} parent=11 // pred_check
          %p462 = pneg %p266
        $region50: #{tpu_custom_call.1} parent=11 // pred_check_branch
          %464 = sbr.rel (%p462) target = $region52
        $region51: #{tpu_custom_call.1} parent=11 // pred_region
          _
        $region52: #{tpu_custom_call.1} parent=11 // pred_fallthru
          _
        // Predicated region
        $region53: #{tpu_custom_call.1} parent=11 // pred_check
          %p465 = pneg %p287
        $region54: #{tpu_custom_call.1} parent=11 // pred_check_branch
          %467 = sbr.rel (%p465) target = $region56
        $region55: #{tpu_custom_call.1} parent=11 // pred_region
          _
        $region56: #{tpu_custom_call.1} parent=11 // pred_fallthru
          _
        // Predicated region
        $region57: #{tpu_custom_call.1} parent=11 // pred_check
          %p468 = pneg %p308
        $region58: #{tpu_custom_call.1} parent=11 // pred_check_branch
          %470 = sbr.rel (%p468) target = $region60
        $region59: #{tpu_custom_call.1} parent=11 // pred_region
          _
        $region60: #{tpu_custom_call.1} parent=11 // pred_fallthru
          _
        // Predicated region
        $region61: #{tpu_custom_call.1} parent=11 // pred_check
          %p471 = pneg %p329
        $region62: #{tpu_custom_call.1} parent=11 // pred_check_branch
          %473 = sbr.rel (%p471) target = $region64
        $region63: #{tpu_custom_call.1} parent=11 // pred_region
          _
        $region64: #{tpu_custom_call.1} parent=11 // pred_fallthru
          _
        // Predicated region
        $region65: #{tpu_custom_call.1} parent=11 // pred_check
          %p474 = pneg %p350
        $region66: #{tpu_custom_call.1} parent=11 // pred_check_branch
          %476 = sbr.rel (%p474) target = $region68
        $region67: #{tpu_custom_call.1} parent=11 // pred_region
          _
        $region68: #{tpu_custom_call.1} parent=11 // pred_fallthru
          _
      $region12: #{tpu_custom_call.1} parent=5 // pred_fallthru
        _
      %p477 = scmp.lt.s32.totalorder %s30, 2
      // Predicated region
      $region69: #{tpu_custom_call.1} parent=5 // pred_check
        %p478 = pneg %p477
      $region70: #{tpu_custom_call.1} parent=5 // pred_check_branch
        %480 = sbr.rel (%p478) target = $region72
      $region71: #{tpu_custom_call.1} parent=5 // pred_region
        // Predicated region
        $region73: #{tpu_custom_call.1} parent=71 // pred_check
          %p481 = pneg %p50
        $region74: #{tpu_custom_call.1} parent=71 // pred_check_branch
          %483 = sbr.rel (%p481) target = $region76
        $region75: #{tpu_custom_call.1} parent=71 // pred_region
          %s484 = sand.u32 %s40, 1
          %s485 = scalar_lea.sflag [#allocation4], %s484
          %s486 = sand.u32 %s40, 1
          %s487 = smul.addr %s486, 64
          %s488 = scalar_lea.vmem [#allocation3], %s487
          %s490 = ssub.s32 1024, 1024
          %491 = vsyncadd %s485, %s490
          %s492 = smul.addr %s30, 8
          %s493 = smul.addr %s492, 128
          %s494 = scalar_lea.hbm %s0, %s493
          %s495 = sshll.u32 %s488, 4
          %s496 = int_to_ptr.vmem [resolvable:$true] %s495
          %501 = dma.hbm_to_vmem [thread:$0]  %s494, 1024, %s496, %s485, 128, 128, 8
        $region76: #{tpu_custom_call.1} parent=71 // pred_fallthru
          _
      $region72: #{tpu_custom_call.1} parent=5 // pred_fallthru
        _
      %p502 = scmp.le.s32.totalorder 1, %s30
      %p503 = scmp.lt.s32.totalorder %s30, 3
      %p504 = pnand %p502, %p503
      %p505 = pneg %p504
      // Predicated region
      $region77: #{tpu_custom_call.1} parent=5 // pred_check
        _
      $region78: #{tpu_custom_call.1} parent=5 // pred_check_branch
        %507 = sbr.rel (%p504) target = $region80
      $region79: #{tpu_custom_call.1} parent=5 // pred_region
        %s508 = ssub.s32 %s30, 1
        %s509 = sand.u32 %s43, 1
        %s510 = scalar_lea.sflag [#allocation4], %s509
        %s511 = sand.u32 %s43, 1
        %s512 = smul.addr %s511, 64
        %s513 = scalar_lea.vmem [#allocation3], %s512
        // Predicated region
        $region81: #{tpu_custom_call.1} parent=79 // pred_check
          %p514 = pneg %p56
        $region82: #{tpu_custom_call.1} parent=79 // pred_check_branch
          %516 = sbr.rel (%p514) target = $region84
        $region83: #{tpu_custom_call.1} parent=79 // pred_region
          %517 = dma.done %s510, 1024
        $region84: #{tpu_custom_call.1} parent=79 // pred_fallthru
          _
        // Predicated region
        $region85: #{tpu_custom_call.1} parent=79 // pred_check
          %p518 = pneg %p77
        $region86: #{tpu_custom_call.1} parent=79 // pred_check_branch
          %520 = sbr.rel (%p518) target = $region88
        $region87: #{tpu_custom_call.1} parent=79 // pred_region
          %521 = dma.done [#allocation7], 1024
        $region88: #{tpu_custom_call.1} parent=79 // pred_fallthru
          _
        // Predicated region
        $region89: #{tpu_custom_call.1} parent=79 // pred_check
          %p522 = pneg %p161
        $region90: #{tpu_custom_call.1} parent=79 // pred_check_branch
          %524 = sbr.rel (%p522) target = $region92
        $region91: #{tpu_custom_call.1} parent=79 // pred_region
          %525 = dma.done [#allocation7], 192
        $region92: #{tpu_custom_call.1} parent=79 // pred_fallthru
          _
        // Predicated region
        $region93: #{tpu_custom_call.1} parent=79 // pred_check
          %p526 = pneg %p182
        $region94: #{tpu_custom_call.1} parent=79 // pred_check_branch
          %528 = sbr.rel (%p526) target = $region96
        $region95: #{tpu_custom_call.1} parent=79 // pred_region
          %529 = dma.done [#allocation10], 16
        $region96: #{tpu_custom_call.1} parent=79 // pred_fallthru
          _
        // Predicated region
        $region97: #{tpu_custom_call.1} parent=79 // pred_check
          %p530 = pneg %p203
        $region98: #{tpu_custom_call.1} parent=79 // pred_check_branch
          %532 = sbr.rel (%p530) target = $region100
        $region99: #{tpu_custom_call.1} parent=79 // pred_region
          %533 = dma.done [#allocation10], 16
        $region100: #{tpu_custom_call.1} parent=79 // pred_fallthru
          _
        // Predicated region
        $region101: #{tpu_custom_call.1} parent=79 // pred_check
          %p534 = pneg %p245
        $region102: #{tpu_custom_call.1} parent=79 // pred_check_branch
          %536 = sbr.rel (%p534) target = $region104
        $region103: #{tpu_custom_call.1} parent=79 // pred_region
          %537 = dma.done [#allocation13], 16
        $region104: #{tpu_custom_call.1} parent=79 // pred_fallthru
          _
        %s538 = sand.u32 %s43, 1
        %s539 = scalar_lea.sflag [#allocation4], %s538
        %s540 = sand.u32 %s43, 1
        %s541 = smul.addr %s540, 64
        %s542 = scalar_lea.vmem [#allocation3], %s541
        %p543 = pneg %p56
        %p544 = pneg %p53
        %p545 = pneg %p77
        %p546 = pneg %p74
        %p547 = pneg %p98
        %p548 = pneg %p95
        %p549 = pneg %p119
        %p550 = pneg %p116
        %p551 = pneg %p140
        %p552 = pneg %p137
        %p553 = pneg %p161
        %p554 = pneg %p158
        %p555 = pneg %p182
        %p556 = pneg %p179
        %p557 = pneg %p203
        %p558 = pneg %p200
        %p559 = pneg %p224
        %p560 = pneg %p221
        %p561 = pneg %p245
        %p562 = pneg %p242
        %p563 = pneg %p266
        %p564 = pneg %p263
        %p565 = pneg %p287
        %p566 = pneg %p284
        %p567 = pneg %p308
        %p568 = pneg %p305
        %p569 = pneg %p329
        %p570 = pneg %p326
        %p571 = pneg %p350
        %p572 = pneg %p347
        %p573 = pneg %p376
        %p574 = pneg %p373
        %s575 = sand.u32 %s363, 1
        %s576 = scalar_lea.sflag [#allocation5], %s575
        %s577 = sand.u32 %s363, 1
        %s578 = smul.addr %s577, 64
        %s579 = scalar_lea.vmem [#allocation14], %s578
        %v580 = vld [vmem:[%s513] sm:$0xff]
        %v581 = vld [vmem:[%s513 + $0x8] sm:$0xff]
        %v582 = vld [vmem:[%s513 + $0x10] sm:$0xff]
        %v583 = vld [vmem:[%s513 + $0x18] sm:$0xff]
        %v584 = vld [vmem:[%s513 + $0x20] sm:$0xff]
        %v585 = vld [vmem:[%s513 + $0x28] sm:$0xff]
        %v586 = vld [vmem:[%s513 + $0x30] sm:$0xff]
        %v587 = vld [vmem:[%s513 + $0x38] sm:$0xff]
        %v588 = vld [vmem:[#allocation6] sm:$0xff]
        %v589 = vld [vmem:[#allocation6 + $0x8] sm:$0xff]
        %v590 = vld [vmem:[#allocation6 + $0x10] sm:$0xff]
        %v591 = vld [vmem:[#allocation6 + $0x18] sm:$0xff]
        %v592 = vld [vmem:[#allocation6 + $0x20] sm:$0xff]
        %v593 = vld [vmem:[#allocation6 + $0x28] sm:$0xff]
        %v594 = vld [vmem:[#allocation6 + $0x30] sm:$0xff]
        %v595 = vld [vmem:[#allocation6 + $0x38] sm:$0xff]
        %v596 = vadd.f32 %v580, %v588
        %v597 = vadd.f32 %v581, %v589
        %v598 = vadd.f32 %v582, %v590
        %v599 = vadd.f32 %v583, %v591
        %v600 = vadd.f32 %v584, %v592
        %v601 = vadd.f32 %v585, %v593
        %v602 = vadd.f32 %v586, %v594
        %v603 = vadd.f32 %v587, %v595
        %v604 = vld [vmem:[%s2] sm:$0xff]
        %v605 = vld [vmem:[%s2 + $0x8] sm:$0xff]
        %v606 = vld [vmem:[%s2 + $0x10] sm:$0xff]
        %v607 = vld [vmem:[%s2 + $0x18] sm:$0xff]
        %vm608 = vcmask 261120
        %v610 = vsel %vm608, %v596, 0
        %v613 = vsel %vm608, %v597, 0
        %v616 = vsel %vm608, %v598, 0
        %v619 = vsel %vm608, %v599, 0
        %v622 = vsel %vm608, %v600, 0
        %v625 = vsel %vm608, %v601, 0
        %v628 = vsel %vm608, %v602, 0
        %v631 = vsel %vm608, %v603, 0
        %633 = vmatprep.subr.mxu0 0.0
        %634 = vmatpush1.msra.mxu0 %v604
        %635 = vmatprep.subr.mxu0 0.0
        %636 = vmatpush1.msra.mxu0 %v605
        %637 = vmatprep.subr.mxu0 0.0
        %638 = vmatpush1.msra.mxu0 %v606
        %639 = vmatprep.subr.mxu0 0.0
        %640 = vmatpush1.msra.mxu0 %v607
        %641 = vmatprep.subr.mxu0 0.0
        %642 = vmatpush1.msra.mxu0 0.0
        %643 = vmatprep.subr.mxu0 0.0
        %644 = vmatpush1.msra.mxu0 0.0
        %645 = vmatprep.subr.mxu0 0.0
        %646 = vmatpush1.msra.mxu0 0.0
        %647 = vmatprep.subr.mxu0 0.0
        %648 = vmatpush1.msra.mxu0 0.0
        %649 = vmatprep.subr.mxu0 0.0
        %650 = vmatpush1.msra.mxu0 0.0
        %651 = vmatprep.subr.mxu0 0.0
        %652 = vmatpush1.msra.mxu0 0.0
        %653 = vmatprep.subr.mxu0 0.0
        %654 = vmatpush1.msra.mxu0 0.0
        %655 = vmatprep.subr.mxu0 0.0
        %656 = vmatpush1.msra.mxu0 0.0
        %657 = vmatprep.subr.mxu0 0.0
        %658 = vmatpush1.msra.mxu0 0.0
        %659 = vmatprep.subr.mxu0 0.0
        %660 = vmatpush1.msra.mxu0 0.0
        %661 = vmatprep.subr.mxu0 0.0
        %662 = vmatpush1.msra.mxu0 0.0
        %663 = vmatprep.subr.mxu0 0.0
        %664 = vmatpush1.msra.mxu0 0.0
        %665 = vmatprep.subr.mxu0 0.0
        %666 = vmatpush1.msra.mxu0 0.0
        %667 = vmatprep.subr.mxu0 0.0
        %668 = vmatpush1.msra.mxu0 0.0
        %669 = vmatprep.subr.mxu0 0.0
        %670 = vmatpush1.msra.mxu0 0.0
        %671 = vmatprep.subr.mxu0 0.0
        %672 = vmatpush1.msra.mxu0 0.0
        %673 = vmatprep.subr.mxu0 0.0
        %674 = vmatpush1.msra.mxu0 0.0
        %675 = vmatprep.subr.mxu0 0.0
        %676 = vmatpush1.msra.mxu0 0.0
        %677 = vmatprep.subr.mxu0 0.0
        %678 = vmatpush1.msra.mxu0 0.0
        %679 = vmatprep.subr.mxu0 0.0
        %680 = vmatpush1.msra.mxu0 0.0
        %681 = vmatprep.subr.mxu0 0.0
        %682 = vmatpush1.msra.mxu0 0.0
        %683 = vmatprep.subr.mxu0 0.0
        %684 = vmatpush1.msra.mxu0 0.0
        %685 = vmatprep.subr.mxu0 0.0
        %686 = vmatpush1.msra.mxu0 0.0
        %687 = vmatprep.subr.mxu0 0.0
        %688 = vmatpush1.msra.mxu0 0.0
        %689 = vmatprep.subr.mxu0 0.0
        %690 = vmatpush1.msra.mxu0 0.0
        %691 = vmatprep.subr.mxu0 0.0
        %692 = vmatpush1.msra.mxu0 0.0
        %693 = vmatprep.subr.mxu0 0.0
        %694 = vmatpush1.msra.mxu0 0.0
        %695 = vmatprep.subr.mxu0 0.0
        %696 = vmatpush1.msra.mxu0 0.0
        %697 = vmatprep.mubr.f32.mxu0 0.0
        %698 = vmatmul.mubr.f32.gmra.mrb[0].mxu0 %v610
        %v699 = vpop.f32.mrb[0].mxu0
        %v700 = vadd.f32 0.0, %v699
        %v701 = vpop.f32.mrb[0].mxu0
        %702 = vmatprep.mubr.f32.mxu0 0.0
        %703 = vmatmul.mubr.f32.gmra.mrb[0].mxu0 %v613
        %v704 = vpop.f32.mrb[0].mxu0
        %v705 = vadd.f32 0.0, %v704
        %v706 = vpop.f32.mrb[0].mxu0
        %707 = vmatprep.mubr.f32.mxu0 0.0
        %708 = vmatmul.mubr.f32.gmra.mrb[0].mxu0 %v616
        %v709 = vpop.f32.mrb[0].mxu0
        %v710 = vadd.f32 0.0, %v709
        %v711 = vpop.f32.mrb[0].mxu0
        %712 = vmatprep.mubr.f32.mxu0 0.0
        %713 = vmatmul.mubr.f32.gmra.mrb[0].mxu0 %v619
        %v714 = vpop.f32.mrb[0].mxu0
        %v715 = vadd.f32 0.0, %v714
        %v716 = vpop.f32.mrb[0].mxu0
        %717 = vmatprep.mubr.f32.mxu0 0.0
        %718 = vmatmul.mubr.f32.gmra.mrb[0].mxu0 %v622
        %v719 = vpop.f32.mrb[0].mxu0
        %v720 = vadd.f32 0.0, %v719
        %v721 = vpop.f32.mrb[0].mxu0
        %722 = vmatprep.mubr.f32.mxu0 0.0
        %723 = vmatmul.mubr.f32.gmra.mrb[0].mxu0 %v625
        %v724 = vpop.f32.mrb[0].mxu0
        %v725 = vadd.f32 0.0, %v724
        %v726 = vpop.f32.mrb[0].mxu0
        %727 = vmatprep.mubr.f32.mxu0 0.0
        %728 = vmatmul.mubr.f32.gmra.mrb[0].mxu0 %v628
        %v729 = vpop.f32.mrb[0].mxu0
        %v730 = vadd.f32 0.0, %v729
        %v731 = vpop.f32.mrb[0].mxu0
        %732 = vmatprep.mubr.f32.mxu0 0.0
        %733 = vmatmul.mubr.f32.gmra.mrb[0].mxu0 %v631
        %v734 = vpop.f32.mrb[0].mxu0
        %v735 = vadd.f32 0.0, %v734
        %v736 = vpop.f32.mrb[0].mxu0
        %737 = vdwg.mxu0
        %v738 = vld [vmem:[%s3] sm:$0x1]
        %v739 = vld [vmem:[%s4] sm:$0x1]
        %v740 = vsel %vm608, %v700, 0.0
        %741 = vadd.xlane.f32.xlu0 %v740
        %v742 = vpop.xlane.xlu0 %741
        %v743 = vsel %vm608, %v705, 0.0
        %744 = vadd.xlane.f32.xlu0 %v743
        %v745 = vpop.xlane.xlu0 %744
        %v746 = vsel %vm608, %v710, 0.0
        %747 = vadd.xlane.f32.xlu0 %v746
        %v748 = vpop.xlane.xlu0 %747
        %v749 = vsel %vm608, %v715, 0.0
        %750 = vadd.xlane.f32.xlu0 %v749
        %v751 = vpop.xlane.xlu0 %750
        %v752 = vsel %vm608, %v720, 0.0
        %753 = vadd.xlane.f32.xlu0 %v752
        %v754 = vpop.xlane.xlu0 %753
        %v755 = vsel %vm608, %v725, 0.0
        %756 = vadd.xlane.f32.xlu0 %v755
        %v757 = vpop.xlane.xlu0 %756
        %v758 = vsel %vm608, %v730, 0.0
        %759 = vadd.xlane.f32.xlu0 %v758
        %v760 = vpop.xlane.xlu0 %759
        %v761 = vsel %vm608, %v735, 0.0
        %762 = vadd.xlane.f32.xlu0 %v761
        %v763 = vpop.xlane.xlu0 %762
        %v764 = vrcp.pop 32.0
        %v765 = vmul.f32 %v742, %v764
        %v766 = vmul.f32 %v745, %v764
        %v767 = vmul.f32 %v748, %v764
        %v768 = vmul.f32 %v751, %v764
        %v769 = vmul.f32 %v754, %v764
        %v770 = vmul.f32 %v757, %v764
        %v771 = vmul.f32 %v760, %v764
        %v772 = vmul.f32 %v763, %v764
        %v773 = vsub.f32 %v700, %v765
        %v774 = vsub.f32 %v705, %v766
        %v775 = vsub.f32 %v710, %v767
        %v776 = vsub.f32 %v715, %v768
        %v777 = vsub.f32 %v720, %v769
        %v778 = vsub.f32 %v725, %v770
        %v779 = vsub.f32 %v730, %v771
        %v780 = vsub.f32 %v735, %v772
        %v781 = vmul.f32 %v773, %v773
        %v782 = vmul.f32 %v774, %v774
        %v783 = vmul.f32 %v775, %v775
        %v784 = vmul.f32 %v776, %v776
        %v785 = vmul.f32 %v777, %v777
        %v786 = vmul.f32 %v778, %v778
        %v787 = vmul.f32 %v779, %v779
        %v788 = vmul.f32 %v780, %v780
        %v789 = vsel %vm608, %v781, 0.0
        %790 = vadd.xlane.f32.xlu0 %v789
        %v791 = vpop.xlane.xlu0 %790
        %v792 = vsel %vm608, %v782, 0.0
        %793 = vadd.xlane.f32.xlu0 %v792
        %v794 = vpop.xlane.xlu0 %793
        %v795 = vsel %vm608, %v783, 0.0
        %796 = vadd.xlane.f32.xlu0 %v795
        %v797 = vpop.xlane.xlu0 %796
        %v798 = vsel %vm608, %v784, 0.0
        %799 = vadd.xlane.f32.xlu0 %v798
        %v800 = vpop.xlane.xlu0 %799
        %v801 = vsel %vm608, %v785, 0.0
        %802 = vadd.xlane.f32.xlu0 %v801
        %v803 = vpop.xlane.xlu0 %802
        %v804 = vsel %vm608, %v786, 0.0
        %805 = vadd.xlane.f32.xlu0 %v804
        %v806 = vpop.xlane.xlu0 %805
        %v807 = vsel %vm608, %v787, 0.0
        %808 = vadd.xlane.f32.xlu0 %v807
        %v809 = vpop.xlane.xlu0 %808
        %v810 = vsel %vm608, %v788, 0.0
        %811 = vadd.xlane.f32.xlu0 %v810
        %v812 = vpop.xlane.xlu0 %811
        %v813 = vmul.f32 %v791, %v764
        %v814 = vmul.f32 %v794, %v764
        %v815 = vmul.f32 %v797, %v764
        %v816 = vmul.f32 %v800, %v764
        %v817 = vmul.f32 %v803, %v764
        %v818 = vmul.f32 %v806, %v764
        %v819 = vmul.f32 %v809, %v764
        %v820 = vmul.f32 %v812, %v764
        %v821 = vadd.f32 %v813, 1e-06
        %v822 = vadd.f32 %v814, 1e-06
        %v823 = vadd.f32 %v815, 1e-06
        %v824 = vadd.f32 %v816, 1e-06
        %v825 = vadd.f32 %v817, 1e-06
        %v826 = vadd.f32 %v818, 1e-06
        %v827 = vadd.f32 %v819, 1e-06
        %v828 = vadd.f32 %v820, 1e-06
        %v829 = vrsqrt.pop %v821
        %v830 = vrsqrt.pop %v822
        %v831 = vrsqrt.pop %v823
        %v832 = vrsqrt.pop %v824
        %v833 = vrsqrt.pop %v825
        %v834 = vrsqrt.pop %v826
        %v835 = vrsqrt.pop %v827
        %v836 = vrsqrt.pop %v828
        %v837 = vmul.f32 %v773, %v829
        %v838 = vmul.f32 %v774, %v830
        %v839 = vmul.f32 %v775, %v831
        %v840 = vmul.f32 %v776, %v832
        %v841 = vmul.f32 %v777, %v833
        %v842 = vmul.f32 %v778, %v834
        %v843 = vmul.f32 %v779, %v835
        %v844 = vmul.f32 %v780, %v836
        %v846 = vlaneseq
        %v847 = vshrl.u32 %v846, 7
        %v848 = vsub.s32 0, %v847
        %v849 = vrot.slane %v738, %v848
        %v851 = vmul.f32 %v837, %v849
        %v852 = vmul.f32 %v838, %v849
        %v853 = vmul.f32 %v839, %v849
        %v854 = vmul.f32 %v840, %v849
        %v855 = vmul.f32 %v841, %v849
        %v856 = vmul.f32 %v842, %v849
        %v857 = vmul.f32 %v843, %v849
        %v858 = vmul.f32 %v844, %v849
        %v860 = vlaneseq
        %v861 = vshrl.u32 %v860, 7
        %v862 = vsub.s32 0, %v861
        %v863 = vrot.slane %v739, %v862
        %v865 = vadd.f32 %v851, %v863
        %v866 = vadd.f32 %v852, %v863
        %v867 = vadd.f32 %v853, %v863
        %v868 = vadd.f32 %v854, %v863
        %v869 = vadd.f32 %v855, %v863
        %v870 = vadd.f32 %v856, %v863
        %v871 = vadd.f32 %v857, %v863
        %v872 = vadd.f32 %v858, %v863
        %v873 = vxor.u32 %v865, 2147483648
        %v874 = vxor.u32 %v866, 2147483648
        %v875 = vxor.u32 %v867, 2147483648
        %v876 = vxor.u32 %v868, 2147483648
        %v877 = vxor.u32 %v869, 2147483648
        %v878 = vxor.u32 %v870, 2147483648
        %v879 = vxor.u32 %v871, 2147483648
        %v880 = vxor.u32 %v872, 2147483648
        %v881 = vmul.f32 %v873, 1.442695
        %v882 = vpow.pop %v881
        %v883 = vmul.f32 %v874, 1.442695
        %v884 = vpow.pop %v883
        %v885 = vmul.f32 %v875, 1.442695
        %v886 = vpow.pop %v885
        %v887 = vmul.f32 %v876, 1.442695
        %v888 = vpow.pop %v887
        %v889 = vmul.f32 %v877, 1.442695
        %v890 = vpow.pop %v889
        %v891 = vmul.f32 %v878, 1.442695
        %v892 = vpow.pop %v891
        %v893 = vmul.f32 %v879, 1.442695
        %v894 = vpow.pop %v893
        %v895 = vmul.f32 %v880, 1.442695
        %v896 = vpow.pop %v895
        %v897 = vadd.f32 %v882, 1.0
        %v898 = vadd.f32 %v884, 1.0
        %v899 = vadd.f32 %v886, 1.0
        %v900 = vadd.f32 %v888, 1.0
        %v901 = vadd.f32 %v890, 1.0
        %v902 = vadd.f32 %v892, 1.0
        %v903 = vadd.f32 %v894, 1.0
        %v904 = vadd.f32 %v896, 1.0
        %v905 = vrcp.pop %v897
        %v906 = vmul.f32 1.0, %v905
        %v907 = vrcp.pop %v898
        %v908 = vmul.f32 1.0, %v907
        %v909 = vrcp.pop %v899
        %v910 = vmul.f32 1.0, %v909
        %v911 = vrcp.pop %v900
        %v912 = vmul.f32 1.0, %v911
        %v913 = vrcp.pop %v901
        %v914 = vmul.f32 1.0, %v913
        %v915 = vrcp.pop %v902
        %v916 = vmul.f32 1.0, %v915
        %v917 = vrcp.pop %v903
        %v918 = vmul.f32 1.0, %v917
        %v919 = vrcp.pop %v904
        %v920 = vmul.f32 1.0, %v919
        %v921 = vmul.f32 %v865, %v906
        %v922 = vmul.f32 %v866, %v908
        %v923 = vmul.f32 %v867, %v910
        %v924 = vmul.f32 %v868, %v912
        %v925 = vmul.f32 %v869, %v914
        %v926 = vmul.f32 %v870, %v916
        %v927 = vmul.f32 %v871, %v918
        %v928 = vmul.f32 %v872, %v920
        %929 = vst.msk [vmem:[#allocation2] sm:$0xff] %vm608, 0.0
        %930 = vst.msk [vmem:[#allocation2 + $0x8] sm:$0xff] %vm608, 0.0
        %vm931 = vcmask 253952
        %932 = vst.msk [vmem:[#allocation2 + $0x10] sm:$0x1] %vm931, 0.0
        %933 = vst.msk [vmem:[#allocation2 + $0x18] sm:$0xff] %vm608, 0.0
        %934 = vst.msk [vmem:[#allocation2 + $0x20] sm:$0xff] %vm608, 0.0
        %935 = vst.msk [vmem:[#allocation2 + $0x28] sm:$0x1] %vm931, 0.0
        %936 = vst.msk [vmem:[#allocation2 + $0x30] sm:$0xff] %vm608, 0.0
        %937 = vst.msk [vmem:[#allocation2 + $0x38] sm:$0xff] %vm608, 0.0
        %938 = vst.msk [vmem:[#allocation2 + $0x40] sm:$0x1] %vm931, 0.0
        %939 = vst.msk [vmem:[#allocation2 + $0x48] sm:$0xff] %vm608, 0.0
        %940 = vst.msk [vmem:[#allocation2 + $0x50] sm:$0xff] %vm608, 0.0
        %941 = vst.msk [vmem:[#allocation2 + $0x58] sm:$0x1] %vm931, 0.0
        %942 = vst.msk [vmem:[#allocation2 + $0x60] sm:$0xff] %vm608, 0.0
        %943 = vst.msk [vmem:[#allocation2 + $0x68] sm:$0xff] %vm608, 0.0
        %944 = vst.msk [vmem:[#allocation2 + $0x70] sm:$0x1] %vm931, 0.0
        %945 = vst.msk [vmem:[#allocation2 + $0x78] sm:$0xff] %vm608, 0.0
        %946 = vst.msk [vmem:[#allocation2 + $0x80] sm:$0xff] %vm608, 0.0
        %947 = vst.msk [vmem:[#allocation2 + $0x88] sm:$0x1] %vm931, 0.0
        %948 = vst.msk [vmem:[#allocation2 + $0x90] sm:$0xff] %vm608, 0.0
        %949 = vst.msk [vmem:[#allocation2 + $0x98] sm:$0xff] %vm608, 0.0
        %950 = vst.msk [vmem:[#allocation2 + $0xa0] sm:$0x1] %vm931, 0.0
        %951 = vst.msk [vmem:[#allocation2 + $0xa8] sm:$0xff] %vm608, 0.0
        %952 = vst.msk [vmem:[#allocation2 + $0xb0] sm:$0xff] %vm608, 0.0
        %953 = vst.msk [vmem:[#allocation2 + $0xb8] sm:$0x1] %vm931, 0.0
        %954 = vst.msk [vmem:[#allocation2 + $0xc0] sm:$0xff] %vm608, 0.0
        %955 = vst.msk [vmem:[#allocation2 + $0xc8] sm:$0xff] %vm608, 0.0
        %956 = vst.msk [vmem:[#allocation2 + $0xd0] sm:$0x1] %vm931, 0.0
        %957 = vst.msk [vmem:[#allocation2 + $0xd8] sm:$0xff] %vm608, 0.0
        %958 = vst.msk [vmem:[#allocation2 + $0xe0] sm:$0xff] %vm608, 0.0
        %959 = vst.msk [vmem:[#allocation2 + $0xe8] sm:$0x1] %vm931, 0.0
        %s960 = scalar_lea.vmem [#allocation2], 24
        %961 = vst.msk [vmem:[%s960 + $0x8] sm:$0xff] %vm608, %v921
        %962 = vst.msk [vmem:[%s960 + $0x20] sm:$0xff] %vm608, %v922
        %963 = vst.msk [vmem:[%s960 + $0x38] sm:$0xff] %vm608, %v923
        %964 = vst.msk [vmem:[%s960 + $0x50] sm:$0xff] %vm608, %v924
        %965 = vst.msk [vmem:[%s960 + $0x68] sm:$0xff] %vm608, %v925
        %966 = vst.msk [vmem:[%s960 + $0x80] sm:$0xff] %vm608, %v926
        %967 = vst.msk [vmem:[%s960 + $0x98] sm:$0xff] %vm608, %v927
        %968 = vst.msk [vmem:[%s960 + $0xb0] sm:$0xff] %vm608, %v928
        %v969 = vld [vmem:[#allocation8] sm:$0x1]
        %v970 = vld [vmem:[#allocation2 + $0x7] sm:$0xff]
        %v971 = vld [vmem:[#allocation2 + $0x1f] sm:$0xff]
        %v972 = vld [vmem:[#allocation2 + $0x37] sm:$0xff]
        %v973 = vld [vmem:[#allocation2 + $0x4f] sm:$0xff]
        %v974 = vld [vmem:[#allocation2 + $0x67] sm:$0xff]
        %v975 = vld [vmem:[#allocation2 + $0x7f] sm:$0xff]
        %v976 = vld [vmem:[#allocation2 + $0x97] sm:$0xff]
        %v977 = vld [vmem:[#allocation2 + $0xaf] sm:$0xff]
        %v978 = vlaneseq
        %v979 = vshrl.u32 %v978, 7
        %v980 = vsub.s32 0, %v979
        %v981 = vrot.slane %v969, %v980
        %v982 = vmul.f32 %v970, %v981
        %v983 = vmul.f32 %v971, %v981
        %v984 = vmul.f32 %v972, %v981
        %v985 = vmul.f32 %v973, %v981
        %v986 = vmul.f32 %v974, %v981
        %v987 = vmul.f32 %v975, %v981
        %v988 = vmul.f32 %v976, %v981
        %v989 = vmul.f32 %v977, %v981
        %v990 = vadd.f32 %v982, 0.0
        %v991 = vadd.f32 %v983, 0.0
        %v992 = vadd.f32 %v984, 0.0
        %v993 = vadd.f32 %v985, 0.0
        %v994 = vadd.f32 %v986, 0.0
        %v995 = vadd.f32 %v987, 0.0
        %v996 = vadd.f32 %v988, 0.0
        %v997 = vadd.f32 %v989, 0.0
        %v998 = vld [vmem:[#allocation8 + $0x1] sm:$0x1]
        %v999 = vld [vmem:[#allocation2 + $0x8] sm:$0xff]
        %v1000 = vld [vmem:[#allocation2 + $0x20] sm:$0xff]
        %v1001 = vld [vmem:[#allocation2 + $0x38] sm:$0xff]
        %v1002 = vld [vmem:[#allocation2 + $0x50] sm:$0xff]
        %v1003 = vld [vmem:[#allocation2 + $0x68] sm:$0xff]
        %v1004 = vld [vmem:[#allocation2 + $0x80] sm:$0xff]
        %v1005 = vld [vmem:[#allocation2 + $0x98] sm:$0xff]
        %v1006 = vld [vmem:[#allocation2 + $0xb0] sm:$0xff]
        %v1007 = vlaneseq
        %v1008 = vshrl.u32 %v1007, 7
        %v1009 = vsub.s32 0, %v1008
        %v1010 = vrot.slane %v998, %v1009
        %v1011 = vmul.f32 %v999, %v1010
        %v1012 = vmul.f32 %v1000, %v1010
        %v1013 = vmul.f32 %v1001, %v1010
        %v1014 = vmul.f32 %v1002, %v1010
        %v1015 = vmul.f32 %v1003, %v1010
        %v1016 = vmul.f32 %v1004, %v1010
        %v1017 = vmul.f32 %v1005, %v1010
        %v1018 = vmul.f32 %v1006, %v1010
        %v1019 = vadd.f32 %v990, %v1011
        %v1020 = vadd.f32 %v991, %v1012
        %v1021 = vadd.f32 %v992, %v1013
        %v1022 = vadd.f32 %v993, %v1014
        %v1023 = vadd.f32 %v994, %v1015
        %v1024 = vadd.f32 %v995, %v1016
        %v1025 = vadd.f32 %v996, %v1017
        %v1026 = vadd.f32 %v997, %v1018
        %v1027 = vld [vmem:[#allocation8 + $0x2] sm:$0x1]
        %v1028 = vld [vmem:[#allocation2 + $0x9] sm:$0xff]
        %v1029 = vld [vmem:[#allocation2 + $0x21] sm:$0xff]
        %v1030 = vld [vmem:[#allocation2 + $0x39] sm:$0xff]
        %v1031 = vld [vmem:[#allocation2 + $0x51] sm:$0xff]
        %v1032 = vld [vmem:[#allocation2 + $0x69] sm:$0xff]
        %v1033 = vld [vmem:[#allocation2 + $0x81] sm:$0xff]
        %v1034 = vld [vmem:[#allocation2 + $0x99] sm:$0xff]
        %v1035 = vld [vmem:[#allocation2 + $0xb1] sm:$0xff]
        %v1036 = vlaneseq
        %v1037 = vshrl.u32 %v1036, 7
        %v1038 = vsub.s32 0, %v1037
        %v1039 = vrot.slane %v1027, %v1038
        %v1040 = vmul.f32 %v1028, %v1039
        %v1041 = vmul.f32 %v1029, %v1039
        %v1042 = vmul.f32 %v1030, %v1039
        %v1043 = vmul.f32 %v1031, %v1039
        %v1044 = vmul.f32 %v1032, %v1039
        %v1045 = vmul.f32 %v1033, %v1039
        %v1046 = vmul.f32 %v1034, %v1039
        %v1047 = vmul.f32 %v1035, %v1039
        %v1048 = vadd.f32 %v1019, %v1040
        %v1049 = vadd.f32 %v1020, %v1041
        %v1050 = vadd.f32 %v1021, %v1042
        %v1051 = vadd.f32 %v1022, %v1043
        %v1052 = vadd.f32 %v1023, %v1044
        %v1053 = vadd.f32 %v1024, %v1045
        %v1054 = vadd.f32 %v1025, %v1046
        %v1055 = vadd.f32 %v1026, %v1047
        %s1056 = scalar_lea.vmem [#allocation8], 4
        %v1057 = vld [vmem:[%s1056] sm:$0x1]
        %v1058 = vld [vmem:[%s960 + $0x7] sm:$0xff]
        %v1059 = vld [vmem:[%s960 + $0x1f] sm:$0xff]
        %v1060 = vld [vmem:[%s960 + $0x37] sm:$0xff]
        %v1061 = vld [vmem:[%s960 + $0x4f] sm:$0xff]
        %v1062 = vld [vmem:[%s960 + $0x67] sm:$0xff]
        %v1063 = vld [vmem:[%s960 + $0x7f] sm:$0xff]
        %v1064 = vld [vmem:[%s960 + $0x97] sm:$0xff]
        %v1065 = vld [vmem:[%s960 + $0xaf] sm:$0xff]
        %v1066 = vlaneseq
        %v1067 = vshrl.u32 %v1066, 7
        %v1068 = vsub.s32 0, %v1067
        %v1069 = vrot.slane %v1057, %v1068
        %v1070 = vmul.f32 %v1058, %v1069
        %v1071 = vmul.f32 %v1059, %v1069
        %v1072 = vmul.f32 %v1060, %v1069
        %v1073 = vmul.f32 %v1061, %v1069
        %v1074 = vmul.f32 %v1062, %v1069
        %v1075 = vmul.f32 %v1063, %v1069
        %v1076 = vmul.f32 %v1064, %v1069
        %v1077 = vmul.f32 %v1065, %v1069
        %v1078 = vadd.f32 %v1048, %v1070
        %v1079 = vadd.f32 %v1049, %v1071
        %v1080 = vadd.f32 %v1050, %v1072
        %v1081 = vadd.f32 %v1051, %v1073
        %v1082 = vadd.f32 %v1052, %v1074
        %v1083 = vadd.f32 %v1053, %v1075
        %v1084 = vadd.f32 %v1054, %v1076
        %v1085 = vadd.f32 %v1055, %v1077
        %v1086 = vld [vmem:[%s1056 + $0x1] sm:$0x1]
        %v1087 = vld [vmem:[%s960 + $0x8] sm:$0xff]
        %v1088 = vld [vmem:[%s960 + $0x20] sm:$0xff]
        %v1089 = vld [vmem:[%s960 + $0x38] sm:$0xff]
        %v1090 = vld [vmem:[%s960 + $0x50] sm:$0xff]
        %v1091 = vld [vmem:[%s960 + $0x68] sm:$0xff]
        %v1092 = vld [vmem:[%s960 + $0x80] sm:$0xff]
        %v1093 = vld [vmem:[%s960 + $0x98] sm:$0xff]
        %v1094 = vld [vmem:[%s960 + $0xb0] sm:$0xff]
        %v1095 = vlaneseq
        %v1096 = vshrl.u32 %v1095, 7
        %v1097 = vsub.s32 0, %v1096
        %v1098 = vrot.slane %v1086, %v1097
        %v1099 = vmul.f32 %v1087, %v1098
        %v1100 = vmul.f32 %v1088, %v1098
        %v1101 = vmul.f32 %v1089, %v1098
        %v1102 = vmul.f32 %v1090, %v1098
        %v1103 = vmul.f32 %v1091, %v1098
        %v1104 = vmul.f32 %v1092, %v1098
        %v1105 = vmul.f32 %v1093, %v1098
        %v1106 = vmul.f32 %v1094, %v1098
        %v1107 = vadd.f32 %v1078, %v1099
        %v1108 = vadd.f32 %v1079, %v1100
        %v1109 = vadd.f32 %v1080, %v1101
        %v1110 = vadd.f32 %v1081, %v1102
        %v1111 = vadd.f32 %v1082, %v1103
        %v1112 = vadd.f32 %v1083, %v1104
        %v1113 = vadd.f32 %v1084, %v1105
        %v1114 = vadd.f32 %v1085, %v1106
        %v1115 = vld [vmem:[%s1056 + $0x2] sm:$0x1]
        %v1116 = vld [vmem:[%s960 + $0x9] sm:$0xff]
        %v1117 = vld [vmem:[%s960 + $0x21] sm:$0xff]
        %v1118 = vld [vmem:[%s960 + $0x39] sm:$0xff]
        %v1119 = vld [vmem:[%s960 + $0x51] sm:$0xff]
        %v1120 = vld [vmem:[%s960 + $0x69] sm:$0xff]
        %v1121 = vld [vmem:[%s960 + $0x81] sm:$0xff]
        %v1122 = vld [vmem:[%s960 + $0x99] sm:$0xff]
        %v1123 = vld [vmem:[%s960 + $0xb1] sm:$0xff]
        %v1124 = vlaneseq
        %v1125 = vshrl.u32 %v1124, 7
        %v1126 = vsub.s32 0, %v1125
        %v1127 = vrot.slane %v1115, %v1126
        %v1128 = vmul.f32 %v1116, %v1127
        %v1129 = vmul.f32 %v1117, %v1127
        %v1130 = vmul.f32 %v1118, %v1127
        %v1131 = vmul.f32 %v1119, %v1127
        %v1132 = vmul.f32 %v1120, %v1127
        %v1133 = vmul.f32 %v1121, %v1127
        %v1134 = vmul.f32 %v1122, %v1127
        %v1135 = vmul.f32 %v1123, %v1127
        %v1136 = vadd.f32 %v1107, %v1128
        %v1137 = vadd.f32 %v1108, %v1129
        %v1138 = vadd.f32 %v1109, %v1130
        %v1139 = vadd.f32 %v1110, %v1131
        %v1140 = vadd.f32 %v1111, %v1132
        %v1141 = vadd.f32 %v1112, %v1133
        %v1142 = vadd.f32 %v1113, %v1134
        %v1143 = vadd.f32 %v1114, %v1135
        %s1144 = scalar_lea.vmem [#allocation8], 8
        %v1145 = vld [vmem:[%s1144] sm:$0x1]
        %s1146 = scalar_lea.vmem [#allocation2], 48
        %v1147 = vld [vmem:[%s1146 + $0x7] sm:$0xff]
        %v1148 = vld [vmem:[%s1146 + $0x1f] sm:$0xff]
        %v1149 = vld [vmem:[%s1146 + $0x37] sm:$0xff]
        %v1150 = vld [vmem:[%s1146 + $0x4f] sm:$0xff]
        %v1151 = vld [vmem:[%s1146 + $0x67] sm:$0xff]
        %v1152 = vld [vmem:[%s1146 + $0x7f] sm:$0xff]
        %v1153 = vld [vmem:[%s1146 + $0x97] sm:$0xff]
        %v1154 = vld [vmem:[%s1146 + $0xaf] sm:$0xff]
        %v1155 = vlaneseq
        %v1156 = vshrl.u32 %v1155, 7
        %v1157 = vsub.s32 0, %v1156
        %v1158 = vrot.slane %v1145, %v1157
        %v1159 = vmul.f32 %v1147, %v1158
        %v1160 = vmul.f32 %v1148, %v1158
        %v1161 = vmul.f32 %v1149, %v1158
        %v1162 = vmul.f32 %v1150, %v1158
        %v1163 = vmul.f32 %v1151, %v1158
        %v1164 = vmul.f32 %v1152, %v1158
        %v1165 = vmul.f32 %v1153, %v1158
        %v1166 = vmul.f32 %v1154, %v1158
        %v1167 = vadd.f32 %v1136, %v1159
        %v1168 = vadd.f32 %v1137, %v1160
        %v1169 = vadd.f32 %v1138, %v1161
        %v1170 = vadd.f32 %v1139, %v1162
        %v1171 = vadd.f32 %v1140, %v1163
        %v1172 = vadd.f32 %v1141, %v1164
        %v1173 = vadd.f32 %v1142, %v1165
        %v1174 = vadd.f32 %v1143, %v1166
        %v1175 = vld [vmem:[%s1144 + $0x1] sm:$0x1]
        %v1176 = vld [vmem:[%s1146 + $0x8] sm:$0xff]
        %v1177 = vld [vmem:[%s1146 + $0x20] sm:$0xff]
        %v1178 = vld [vmem:[%s1146 + $0x38] sm:$0xff]
        %v1179 = vld [vmem:[%s1146 + $0x50] sm:$0xff]
        %v1180 = vld [vmem:[%s1146 + $0x68] sm:$0xff]
        %v1181 = vld [vmem:[%s1146 + $0x80] sm:$0xff]
        %v1182 = vld [vmem:[%s1146 + $0x98] sm:$0xff]
        %v1183 = vld [vmem:[%s1146 + $0xb0] sm:$0xff]
        %v1184 = vlaneseq
        %v1185 = vshrl.u32 %v1184, 7
        %v1186 = vsub.s32 0, %v1185
        %v1187 = vrot.slane %v1175, %v1186
        %v1188 = vmul.f32 %v1176, %v1187
        %v1189 = vmul.f32 %v1177, %v1187
        %v1190 = vmul.f32 %v1178, %v1187
        %v1191 = vmul.f32 %v1179, %v1187
        %v1192 = vmul.f32 %v1180, %v1187
        %v1193 = vmul.f32 %v1181, %v1187
        %v1194 = vmul.f32 %v1182, %v1187
        %v1195 = vmul.f32 %v1183, %v1187
        %v1196 = vadd.f32 %v1167, %v1188
        %v1197 = vadd.f32 %v1168, %v1189
        %v1198 = vadd.f32 %v1169, %v1190
        %v1199 = vadd.f32 %v1170, %v1191
        %v1200 = vadd.f32 %v1171, %v1192
        %v1201 = vadd.f32 %v1172, %v1193
        %v1202 = vadd.f32 %v1173, %v1194
        %v1203 = vadd.f32 %v1174, %v1195
        %v1204 = vld [vmem:[%s1144 + $0x2] sm:$0x1]
        %v1205 = vld [vmem:[%s1146 + $0x9] sm:$0xff]
        %v1206 = vld [vmem:[%s1146 + $0x21] sm:$0xff]
        %v1207 = vld [vmem:[%s1146 + $0x39] sm:$0xff]
        %v1208 = vld [vmem:[%s1146 + $0x51] sm:$0xff]
        %v1209 = vld [vmem:[%s1146 + $0x69] sm:$0xff]
        %v1210 = vld [vmem:[%s1146 + $0x81] sm:$0xff]
        %v1211 = vld [vmem:[%s1146 + $0x99] sm:$0xff]
        %v1212 = vld [vmem:[%s1146 + $0xb1] sm:$0xff]
        %v1213 = vlaneseq
        %v1214 = vshrl.u32 %v1213, 7
        %v1215 = vsub.s32 0, %v1214
        %v1216 = vrot.slane %v1204, %v1215
        %v1217 = vmul.f32 %v1205, %v1216
        %v1218 = vmul.f32 %v1206, %v1216
        %v1219 = vmul.f32 %v1207, %v1216
        %v1220 = vmul.f32 %v1208, %v1216
        %v1221 = vmul.f32 %v1209, %v1216
        %v1222 = vmul.f32 %v1210, %v1216
        %v1223 = vmul.f32 %v1211, %v1216
        %v1224 = vmul.f32 %v1212, %v1216
        %v1225 = vadd.f32 %v1196, %v1217
        %v1226 = vadd.f32 %v1197, %v1218
        %v1227 = vadd.f32 %v1198, %v1219
        %v1228 = vadd.f32 %v1199, %v1220
        %v1229 = vadd.f32 %v1200, %v1221
        %v1230 = vadd.f32 %v1201, %v1222
        %v1231 = vadd.f32 %v1202, %v1223
        %v1232 = vadd.f32 %v1203, %v1224
        %v1233 = vld [vmem:[#allocation9] sm:$0x1]
        %v1234 = vld [vmem:[#allocation11] sm:$0x1]
        %v1235 = vsel %vm608, %v1225, 0.0
        %1236 = vadd.xlane.f32.xlu0 %v1235
        %v1237 = vpop.xlane.xlu0 %1236
        %v1238 = vsel %vm608, %v1226, 0.0
        %1239 = vadd.xlane.f32.xlu0 %v1238
        %v1240 = vpop.xlane.xlu0 %1239
        %v1241 = vsel %vm608, %v1227, 0.0
        %1242 = vadd.xlane.f32.xlu0 %v1241
        %v1243 = vpop.xlane.xlu0 %1242
        %v1244 = vsel %vm608, %v1228, 0.0
        %1245 = vadd.xlane.f32.xlu0 %v1244
        %v1246 = vpop.xlane.xlu0 %1245
        %v1247 = vsel %vm608, %v1229, 0.0
        %1248 = vadd.xlane.f32.xlu0 %v1247
        %v1249 = vpop.xlane.xlu0 %1248
        %v1250 = vsel %vm608, %v1230, 0.0
        %1251 = vadd.xlane.f32.xlu0 %v1250
        %v1252 = vpop.xlane.xlu0 %1251
        %v1253 = vsel %vm608, %v1231, 0.0
        %1254 = vadd.xlane.f32.xlu0 %v1253
        %v1255 = vpop.xlane.xlu0 %1254
        %v1256 = vsel %vm608, %v1232, 0.0
        %1257 = vadd.xlane.f32.xlu0 %v1256
        %v1258 = vpop.xlane.xlu0 %1257
        %v1259 = vmul.f32 %v1237, %v764
        %v1260 = vmul.f32 %v1240, %v764
        %v1261 = vmul.f32 %v1243, %v764
        %v1262 = vmul.f32 %v1246, %v764
        %v1263 = vmul.f32 %v1249, %v764
        %v1264 = vmul.f32 %v1252, %v764
        %v1265 = vmul.f32 %v1255, %v764
        %v1266 = vmul.f32 %v1258, %v764
        %v1267 = vsub.f32 %v1225, %v1259
        %v1268 = vsub.f32 %v1226, %v1260
        %v1269 = vsub.f32 %v1227, %v1261
        %v1270 = vsub.f32 %v1228, %v1262
        %v1271 = vsub.f32 %v1229, %v1263
        %v1272 = vsub.f32 %v1230, %v1264
        %v1273 = vsub.f32 %v1231, %v1265
        %v1274 = vsub.f32 %v1232, %v1266
        %v1275 = vmul.f32 %v1267, %v1267
        %v1276 = vmul.f32 %v1268, %v1268
        %v1277 = vmul.f32 %v1269, %v1269
        %v1278 = vmul.f32 %v1270, %v1270
        %v1279 = vmul.f32 %v1271, %v1271
        %v1280 = vmul.f32 %v1272, %v1272
        %v1281 = vmul.f32 %v1273, %v1273
        %v1282 = vmul.f32 %v1274, %v1274
        %v1283 = vsel %vm608, %v1275, 0.0
        %1284 = vadd.xlane.f32.xlu0 %v1283
        %v1285 = vpop.xlane.xlu0 %1284
        %v1286 = vsel %vm608, %v1276, 0.0
        %1287 = vadd.xlane.f32.xlu0 %v1286
        %v1288 = vpop.xlane.xlu0 %1287
        %v1289 = vsel %vm608, %v1277, 0.0
        %1290 = vadd.xlane.f32.xlu0 %v1289
        %v1291 = vpop.xlane.xlu0 %1290
        %v1292 = vsel %vm608, %v1278, 0.0
        %1293 = vadd.xlane.f32.xlu0 %v1292
        %v1294 = vpop.xlane.xlu0 %1293
        %v1295 = vsel %vm608, %v1279, 0.0
        %1296 = vadd.xlane.f32.xlu0 %v1295
        %v1297 = vpop.xlane.xlu0 %1296
        %v1298 = vsel %vm608, %v1280, 0.0
        %1299 = vadd.xlane.f32.xlu0 %v1298
        %v1300 = vpop.xlane.xlu0 %1299
        %v1301 = vsel %vm608, %v1281, 0.0
        %1302 = vadd.xlane.f32.xlu0 %v1301
        %v1303 = vpop.xlane.xlu0 %1302
        %v1304 = vsel %vm608, %v1282, 0.0
        %1305 = vadd.xlane.f32.xlu0 %v1304
        %v1306 = vpop.xlane.xlu0 %1305
        %v1307 = vmul.f32 %v1285, %v764
        %v1308 = vmul.f32 %v1288, %v764
        %v1309 = vmul.f32 %v1291, %v764
        %v1310 = vmul.f32 %v1294, %v764
        %v1311 = vmul.f32 %v1297, %v764
        %v1312 = vmul.f32 %v1300, %v764
        %v1313 = vmul.f32 %v1303, %v764
        %v1314 = vmul.f32 %v1306, %v764
        %v1315 = vadd.f32 %v1307, 1e-06
        %v1316 = vadd.f32 %v1308, 1e-06
        %v1317 = vadd.f32 %v1309, 1e-06
        %v1318 = vadd.f32 %v1310, 1e-06
        %v1319 = vadd.f32 %v1311, 1e-06
        %v1320 = vadd.f32 %v1312, 1e-06
        %v1321 = vadd.f32 %v1313, 1e-06
        %v1322 = vadd.f32 %v1314, 1e-06
        %v1323 = vrsqrt.pop %v1315
        %v1324 = vrsqrt.pop %v1316
        %v1325 = vrsqrt.pop %v1317
        %v1326 = vrsqrt.pop %v1318
        %v1327 = vrsqrt.pop %v1319
        %v1328 = vrsqrt.pop %v1320
        %v1329 = vrsqrt.pop %v1321
        %v1330 = vrsqrt.pop %v1322
        %v1331 = vmul.f32 %v1267, %v1323
        %v1332 = vmul.f32 %v1268, %v1324
        %v1333 = vmul.f32 %v1269, %v1325
        %v1334 = vmul.f32 %v1270, %v1326
        %v1335 = vmul.f32 %v1271, %v1327
        %v1336 = vmul.f32 %v1272, %v1328
        %v1337 = vmul.f32 %v1273, %v1329
        %v1338 = vmul.f32 %v1274, %v1330
        %v1340 = vlaneseq
        %v1341 = vshrl.u32 %v1340, 7
        %v1342 = vsub.s32 0, %v1341
        %v1343 = vrot.slane %v1233, %v1342
        %v1345 = vmul.f32 %v1331, %v1343
        %v1346 = vmul.f32 %v1332, %v1343
        %v1347 = vmul.f32 %v1333, %v1343
        %v1348 = vmul.f32 %v1334, %v1343
        %v1349 = vmul.f32 %v1335, %v1343
        %v1350 = vmul.f32 %v1336, %v1343
        %v1351 = vmul.f32 %v1337, %v1343
        %v1352 = vmul.f32 %v1338, %v1343
        %v1354 = vlaneseq
        %v1355 = vshrl.u32 %v1354, 7
        %v1356 = vsub.s32 0, %v1355
        %v1357 = vrot.slane %v1234, %v1356
        %v1359 = vadd.f32 %v1345, %v1357
        %v1360 = vadd.f32 %v1346, %v1357
        %v1361 = vadd.f32 %v1347, %v1357
        %v1362 = vadd.f32 %v1348, %v1357
        %v1363 = vadd.f32 %v1349, %v1357
        %v1364 = vadd.f32 %v1350, %v1357
        %v1365 = vadd.f32 %v1351, %v1357
        %v1366 = vadd.f32 %v1352, %v1357
        %v1367 = vxor.u32 %v1359, 2147483648
        %v1368 = vxor.u32 %v1360, 2147483648
        %v1369 = vxor.u32 %v1361, 2147483648
        %v1370 = vxor.u32 %v1362, 2147483648
        %v1371 = vxor.u32 %v1363, 2147483648
        %v1372 = vxor.u32 %v1364, 2147483648
        %v1373 = vxor.u32 %v1365, 2147483648
        %v1374 = vxor.u32 %v1366, 2147483648
        %v1375 = vmul.f32 %v1367, 1.442695
        %v1376 = vpow.pop %v1375
        %v1377 = vmul.f32 %v1368, 1.442695
        %v1378 = vpow.pop %v1377
        %v1379 = vmul.f32 %v1369, 1.442695
        %v1380 = vpow.pop %v1379
        %v1381 = vmul.f32 %v1370, 1.442695
        %v1382 = vpow.pop %v1381
        %v1383 = vmul.f32 %v1371, 1.442695
        %v1384 = vpow.pop %v1383
        %v1385 = vmul.f32 %v1372, 1.442695
        %v1386 = vpow.pop %v1385
        %v1387 = vmul.f32 %v1373, 1.442695
        %v1388 = vpow.pop %v1387
        %v1389 = vmul.f32 %v1374, 1.442695
        %v1390 = vpow.pop %v1389
        %v1391 = vadd.f32 %v1376, 1.0
        %v1392 = vadd.f32 %v1378, 1.0
        %v1393 = vadd.f32 %v1380, 1.0
        %v1394 = vadd.f32 %v1382, 1.0
        %v1395 = vadd.f32 %v1384, 1.0
        %v1396 = vadd.f32 %v1386, 1.0
        %v1397 = vadd.f32 %v1388, 1.0
        %v1398 = vadd.f32 %v1390, 1.0
        %v1399 = vrcp.pop %v1391
        %v1400 = vmul.f32 1.0, %v1399
        %v1401 = vrcp.pop %v1392
        %v1402 = vmul.f32 1.0, %v1401
        %v1403 = vrcp.pop %v1393
        %v1404 = vmul.f32 1.0, %v1403
        %v1405 = vrcp.pop %v1394
        %v1406 = vmul.f32 1.0, %v1405
        %v1407 = vrcp.pop %v1395
        %v1408 = vmul.f32 1.0, %v1407
        %v1409 = vrcp.pop %v1396
        %v1410 = vmul.f32 1.0, %v1409
        %v1411 = vrcp.pop %v1397
        %v1412 = vmul.f32 1.0, %v1411
        %v1413 = vrcp.pop %v1398
        %v1414 = vmul.f32 1.0, %v1413
        %v1415 = vmul.f32 %v1359, %v1400
        %v1416 = vmul.f32 %v1360, %v1402
        %v1417 = vmul.f32 %v1361, %v1404
        %v1418 = vmul.f32 %v1362, %v1406
        %v1419 = vmul.f32 %v1363, %v1408
        %v1420 = vmul.f32 %v1364, %v1410
        %v1421 = vmul.f32 %v1365, %v1412
        %v1422 = vmul.f32 %v1366, %v1414
        %v1423 = vsel %vm608, %v1415, 0.0
        %v1424 = vsel %vm608, %v1416, 0.0
        %v1425 = vadd.f32 %v1423, %v1424
        %v1426 = vsel %vm608, %v1417, 0.0
        %v1427 = vadd.f32 %v1425, %v1426
        %v1428 = vsel %vm608, %v1418, 0.0
        %v1429 = vadd.f32 %v1427, %v1428
        %v1430 = vsel %vm608, %v1419, 0.0
        %v1431 = vadd.f32 %v1429, %v1430
        %v1432 = vsel %vm608, %v1420, 0.0
        %v1433 = vadd.f32 %v1431, %v1432
        %v1434 = vsel %vm608, %v1421, 0.0
        %v1435 = vadd.f32 %v1433, %v1434
        %v1436 = vsel %vm608, %v1422, 0.0
        %v1437 = vadd.f32 %v1435, %v1436
        %v1438 = vrot.slane %v1437, 4
        %v1439 = vadd.f32 %v1437, %v1438
        %v1440 = vrot.slane %v1439, 2
        %v1441 = vadd.f32 %v1439, %v1440
        %v1442 = vrot.slane %v1441, 1
        %v1443 = vadd.f32 %v1441, %v1442
        %v1444 = vmul.f32 %v1443, 0.015625
        %v1445 = vld [vmem:[%s8] sm:$0xff]
        %v1446 = vld [vmem:[%s8 + $0x8] sm:$0xff]
        %v1447 = vld [vmem:[%s8 + $0x10] sm:$0xff]
        %v1448 = vld [vmem:[%s8 + $0x18] sm:$0xff]
        %v1449 = vld [vmem:[#allocation12] sm:$0x1]
        %v1451 = vsel %vm608, %v1444, 0
        %1453 = vmatprep.subr.mxu0 0.0
        %1454 = vmatpush1.msra.mxu0 %v1445
        %1455 = vmatprep.subr.mxu0 0.0
        %1456 = vmatpush1.msra.mxu0 %v1446
        %1457 = vmatprep.subr.mxu0 0.0
        %1458 = vmatpush1.msra.mxu0 %v1447
        %1459 = vmatprep.subr.mxu0 0.0
        %1460 = vmatpush1.msra.mxu0 %v1448
        %1461 = vmatprep.subr.mxu0 0.0
        %1462 = vmatpush1.msra.mxu0 0.0
        %1463 = vmatprep.subr.mxu0 0.0
        %1464 = vmatpush1.msra.mxu0 0.0
        %1465 = vmatprep.subr.mxu0 0.0
        %1466 = vmatpush1.msra.mxu0 0.0
        %1467 = vmatprep.subr.mxu0 0.0
        %1468 = vmatpush1.msra.mxu0 0.0
        %1469 = vmatprep.subr.mxu0 0.0
        %1470 = vmatpush1.msra.mxu0 0.0
        %1471 = vmatprep.subr.mxu0 0.0
        %1472 = vmatpush1.msra.mxu0 0.0
        %1473 = vmatprep.subr.mxu0 0.0
        %1474 = vmatpush1.msra.mxu0 0.0
        %1475 = vmatprep.subr.mxu0 0.0
        %1476 = vmatpush1.msra.mxu0 0.0
        %1477 = vmatprep.subr.mxu0 0.0
        %1478 = vmatpush1.msra.mxu0 0.0
        %1479 = vmatprep.subr.mxu0 0.0
        %1480 = vmatpush1.msra.mxu0 0.0
        %1481 = vmatprep.subr.mxu0 0.0
        %1482 = vmatpush1.msra.mxu0 0.0
        %1483 = vmatprep.subr.mxu0 0.0
        %1484 = vmatpush1.msra.mxu0 0.0
        %1485 = vmatprep.subr.mxu0 0.0
        %1486 = vmatpush1.msra.mxu0 0.0
        %1487 = vmatprep.subr.mxu0 0.0
        %1488 = vmatpush1.msra.mxu0 0.0
        %1489 = vmatprep.subr.mxu0 0.0
        %1490 = vmatpush1.msra.mxu0 0.0
        %1491 = vmatprep.subr.mxu0 0.0
        %1492 = vmatpush1.msra.mxu0 0.0
        %1493 = vmatprep.subr.mxu0 0.0
        %1494 = vmatpush1.msra.mxu0 0.0
        %1495 = vmatprep.subr.mxu0 0.0
        %1496 = vmatpush1.msra.mxu0 0.0
        %1497 = vmatprep.subr.mxu0 0.0
        %1498 = vmatpush1.msra.mxu0 0.0
        %1499 = vmatprep.subr.mxu0 0.0
        %1500 = vmatpush1.msra.mxu0 0.0
        %1501 = vmatprep.subr.mxu0 0.0
        %1502 = vmatpush1.msra.mxu0 0.0
        %1503 = vmatprep.subr.mxu0 0.0
        %1504 = vmatpush1.msra.mxu0 0.0
        %1505 = vmatprep.subr.mxu0 0.0
        %1506 = vmatpush1.msra.mxu0 0.0
        %1507 = vmatprep.subr.mxu0 0.0
        %1508 = vmatpush1.msra.mxu0 0.0
        %1509 = vmatprep.subr.mxu0 0.0
        %1510 = vmatpush1.msra.mxu0 0.0
        %1511 = vmatprep.subr.mxu0 0.0
        %1512 = vmatpush1.msra.mxu0 0.0
        %1513 = vmatprep.subr.mxu0 0.0
        %1514 = vmatpush1.msra.mxu0 0.0
        %1515 = vmatprep.subr.mxu0 0.0
        %1516 = vmatpush1.msra.mxu0 0.0
        %1517 = vmatprep.mubr.f32.mxu0 0.0
        %1518 = vmatmul.mubr.f32.gmra.mrb[0].mxu0 %v1451
        %v1519 = vpop.f32.mrb[0].mxu0
        %v1520 = vadd.f32 %v1449, %v1519
        %v1521 = vpop.f32.mrb[0].mxu0
        %1522 = vdwg.mxu0
        %v1523 = vxor.u32 %v1520, 2147483648
        %v1524 = vmul.f32 %v1523, 1.442695
        %v1525 = vpow.pop %v1524
        %v1526 = vadd.f32 %v1525, 1.0
        %v1527 = vrcp.pop %v1526
        %v1528 = vmul.f32 1.0, %v1527
        %v1529 = vmul.f32 %v1520, %v1528
        %v1530 = vld [vmem:[%s10] sm:$0xff]
        %v1531 = vld [vmem:[%s11] sm:$0x1]
        %vm1532 = vcmask 64512
        %v1534 = vsel %vm1532, %v1529, 0
        %1536 = vmatprep.subr.mxu0 0.0
        %1537 = vmatpush1.msra.mxu0 %v1530
        %1538 = vmatprep.subr.mxu0 0.0
        %1539 = vmatpush1.msra.mxu0 0.0
        %1540 = vmatprep.subr.mxu0 0.0
        %1541 = vmatpush1.msra.mxu0 0.0
        %1542 = vmatprep.subr.mxu0 0.0
        %1543 = vmatpush1.msra.mxu0 0.0
        %1544 = vmatprep.subr.mxu0 0.0
        %1545 = vmatpush1.msra.mxu0 0.0
        %1546 = vmatprep.subr.mxu0 0.0
        %1547 = vmatpush1.msra.mxu0 0.0
        %1548 = vmatprep.subr.mxu0 0.0
        %1549 = vmatpush1.msra.mxu0 0.0
        %1550 = vmatprep.subr.mxu0 0.0
        %1551 = vmatpush1.msra.mxu0 0.0
        %1552 = vmatprep.subr.mxu0 0.0
        %1553 = vmatpush1.msra.mxu0 0.0
        %1554 = vmatprep.subr.mxu0 0.0
        %1555 = vmatpush1.msra.mxu0 0.0
        %1556 = vmatprep.subr.mxu0 0.0
        %1557 = vmatpush1.msra.mxu0 0.0
        %1558 = vmatprep.subr.mxu0 0.0
        %1559 = vmatpush1.msra.mxu0 0.0
        %1560 = vmatprep.subr.mxu0 0.0
        %1561 = vmatpush1.msra.mxu0 0.0
        %1562 = vmatprep.subr.mxu0 0.0
        %1563 = vmatpush1.msra.mxu0 0.0
        %1564 = vmatprep.subr.mxu0 0.0
        %1565 = vmatpush1.msra.mxu0 0.0
        %1566 = vmatprep.subr.mxu0 0.0
        %1567 = vmatpush1.msra.mxu0 0.0
        %1568 = vmatprep.subr.mxu0 0.0
        %1569 = vmatpush1.msra.mxu0 0.0
        %1570 = vmatprep.subr.mxu0 0.0
        %1571 = vmatpush1.msra.mxu0 0.0
        %1572 = vmatprep.subr.mxu0 0.0
        %1573 = vmatpush1.msra.mxu0 0.0
        %1574 = vmatprep.subr.mxu0 0.0
        %1575 = vmatpush1.msra.mxu0 0.0
        %1576 = vmatprep.subr.mxu0 0.0
        %1577 = vmatpush1.msra.mxu0 0.0
        %1578 = vmatprep.subr.mxu0 0.0
        %1579 = vmatpush1.msra.mxu0 0.0
        %1580 = vmatprep.subr.mxu0 0.0
        %1581 = vmatpush1.msra.mxu0 0.0
        %1582 = vmatprep.subr.mxu0 0.0
        %1583 = vmatpush1.msra.mxu0 0.0
        %1584 = vmatprep.subr.mxu0 0.0
        %1585 = vmatpush1.msra.mxu0 0.0
        %1586 = vmatprep.subr.mxu0 0.0
        %1587 = vmatpush1.msra.mxu0 0.0
        %1588 = vmatprep.subr.mxu0 0.0
        %1589 = vmatpush1.msra.mxu0 0.0
        %1590 = vmatprep.subr.mxu0 0.0
        %1591 = vmatpush1.msra.mxu0 0.0
        %1592 = vmatprep.subr.mxu0 0.0
        %1593 = vmatpush1.msra.mxu0 0.0
        %1594 = vmatprep.subr.mxu0 0.0
        %1595 = vmatpush1.msra.mxu0 0.0
        %1596 = vmatprep.subr.mxu0 0.0
        %1597 = vmatpush1.msra.mxu0 0.0
        %1598 = vmatprep.subr.mxu0 0.0
        %1599 = vmatpush1.msra.mxu0 0.0
        %1600 = vmatprep.mubr.f32.mxu0 0.0
        %1601 = vmatmul.mubr.f32.gmra.mrb[0].mxu0 %v1534
        %v1602 = vpop.f32.mrb[0].mxu0
        %v1603 = vadd.f32 %v1531, %v1602
        %v1604 = vpop.f32.mrb[0].mxu0
        %1605 = vdwg.mxu0
        %v1606 = vxor.u32 %v1603, 2147483648
        %v1607 = vmul.f32 %v1606, 1.442695
        %v1608 = vpow.pop %v1607
        %v1609 = vadd.f32 %v1608, 1.0
        %v1610 = vrcp.pop %v1609
        %v1611 = vmul.f32 1.0, %v1610
        %v1612 = vlaneseq
        %v1613 = vshrl.u32 %v1612, 7
        %v1614 = vsub.s32 0, %v1613
        %v1615 = vrot.slane %v1611, %v1614
        %v1616 = vmul.f32 %v1415, %v1615
        %v1617 = vmul.f32 %v1416, %v1615
        %v1618 = vmul.f32 %v1417, %v1615
        %v1619 = vmul.f32 %v1418, %v1615
        %v1620 = vmul.f32 %v1419, %v1615
        %v1621 = vmul.f32 %v1420, %v1615
        %v1622 = vmul.f32 %v1421, %v1615
        %v1623 = vmul.f32 %v1422, %v1615
        %v1624 = vld [vmem:[%s12] sm:$0xff]
        %v1625 = vld [vmem:[%s12 + $0x8] sm:$0xff]
        %v1626 = vld [vmem:[%s12 + $0x10] sm:$0xff]
        %v1627 = vld [vmem:[%s12 + $0x18] sm:$0xff]
        %v1629 = vsel %vm608, %v1616, 0
        %v1632 = vsel %vm608, %v1617, 0
        %v1635 = vsel %vm608, %v1618, 0
        %v1638 = vsel %vm608, %v1619, 0
        %v1641 = vsel %vm608, %v1620, 0
        %v1644 = vsel %vm608, %v1621, 0
        %v1647 = vsel %vm608, %v1622, 0
        %v1650 = vsel %vm608, %v1623, 0
        %1652 = vmatprep.subr.mxu0 0.0
        %1653 = vmatpush1.msra.mxu0 %v1624
        %1654 = vmatprep.subr.mxu0 0.0
        %1655 = vmatpush1.msra.mxu0 %v1625
        %1656 = vmatprep.subr.mxu0 0.0
        %1657 = vmatpush1.msra.mxu0 %v1626
        %1658 = vmatprep.subr.mxu0 0.0
        %1659 = vmatpush1.msra.mxu0 %v1627
        %1660 = vmatprep.subr.mxu0 0.0
        %1661 = vmatpush1.msra.mxu0 0.0
        %1662 = vmatprep.subr.mxu0 0.0
        %1663 = vmatpush1.msra.mxu0 0.0
        %1664 = vmatprep.subr.mxu0 0.0
        %1665 = vmatpush1.msra.mxu0 0.0
        %1666 = vmatprep.subr.mxu0 0.0
        %1667 = vmatpush1.msra.mxu0 0.0
        %1668 = vmatprep.subr.mxu0 0.0
        %1669 = vmatpush1.msra.mxu0 0.0
        %1670 = vmatprep.subr.mxu0 0.0
        %1671 = vmatpush1.msra.mxu0 0.0
        %1672 = vmatprep.subr.mxu0 0.0
        %1673 = vmatpush1.msra.mxu0 0.0
        %1674 = vmatprep.subr.mxu0 0.0
        %1675 = vmatpush1.msra.mxu0 0.0
        %1676 = vmatprep.subr.mxu0 0.0
        %1677 = vmatpush1.msra.mxu0 0.0
        %1678 = vmatprep.subr.mxu0 0.0
        %1679 = vmatpush1.msra.mxu0 0.0
        %1680 = vmatprep.subr.mxu0 0.0
        %1681 = vmatpush1.msra.mxu0 0.0
        %1682 = vmatprep.subr.mxu0 0.0
        %1683 = vmatpush1.msra.mxu0 0.0
        %1684 = vmatprep.subr.mxu0 0.0
        %1685 = vmatpush1.msra.mxu0 0.0
        %1686 = vmatprep.subr.mxu0 0.0
        %1687 = vmatpush1.msra.mxu0 0.0
        %1688 = vmatprep.subr.mxu0 0.0
        %1689 = vmatpush1.msra.mxu0 0.0
        %1690 = vmatprep.subr.mxu0 0.0
        %1691 = vmatpush1.msra.mxu0 0.0
        %1692 = vmatprep.subr.mxu0 0.0
        %1693 = vmatpush1.msra.mxu0 0.0
        %1694 = vmatprep.subr.mxu0 0.0
        %1695 = vmatpush1.msra.mxu0 0.0
        %1696 = vmatprep.subr.mxu0 0.0
        %1697 = vmatpush1.msra.mxu0 0.0
        %1698 = vmatprep.subr.mxu0 0.0
        %1699 = vmatpush1.msra.mxu0 0.0
        %1700 = vmatprep.subr.mxu0 0.0
        %1701 = vmatpush1.msra.mxu0 0.0
        %1702 = vmatprep.subr.mxu0 0.0
        %1703 = vmatpush1.msra.mxu0 0.0
        %1704 = vmatprep.subr.mxu0 0.0
        %1705 = vmatpush1.msra.mxu0 0.0
        %1706 = vmatprep.subr.mxu0 0.0
        %1707 = vmatpush1.msra.mxu0 0.0
        %1708 = vmatprep.subr.mxu0 0.0
        %1709 = vmatpush1.msra.mxu0 0.0
        %1710 = vmatprep.subr.mxu0 0.0
        %1711 = vmatpush1.msra.mxu0 0.0
        %1712 = vmatprep.subr.mxu0 0.0
        %1713 = vmatpush1.msra.mxu0 0.0
        %1714 = vmatprep.subr.mxu0 0.0
        %1715 = vmatpush1.msra.mxu0 0.0
        %1716 = vmatprep.mubr.f32.mxu0 0.0
        %1717 = vmatmul.mubr.f32.gmra.mrb[0].mxu0 %v1629
        %v1718 = vpop.f32.mrb[0].mxu0
        %v1719 = vadd.f32 0.0, %v1718
        %v1720 = vpop.f32.mrb[0].mxu0
        %1721 = vmatprep.mubr.f32.mxu0 0.0
        %1722 = vmatmul.mubr.f32.gmra.mrb[0].mxu0 %v1632
        %v1723 = vpop.f32.mrb[0].mxu0
        %v1724 = vadd.f32 0.0, %v1723
        %v1725 = vpop.f32.mrb[0].mxu0
        %1726 = vmatprep.mubr.f32.mxu0 0.0
        %1727 = vmatmul.mubr.f32.gmra.mrb[0].mxu0 %v1635
        %v1728 = vpop.f32.mrb[0].mxu0
        %v1729 = vadd.f32 0.0, %v1728
        %v1730 = vpop.f32.mrb[0].mxu0
        %1731 = vmatprep.mubr.f32.mxu0 0.0
        %1732 = vmatmul.mubr.f32.gmra.mrb[0].mxu0 %v1638
        %v1733 = vpop.f32.mrb[0].mxu0
        %v1734 = vadd.f32 0.0, %v1733
        %v1735 = vpop.f32.mrb[0].mxu0
        %1736 = vmatprep.mubr.f32.mxu0 0.0
        %1737 = vmatmul.mubr.f32.gmra.mrb[0].mxu0 %v1641
        %v1738 = vpop.f32.mrb[0].mxu0
        %v1739 = vadd.f32 0.0, %v1738
        %v1740 = vpop.f32.mrb[0].mxu0
        %1741 = vmatprep.mubr.f32.mxu0 0.0
        %1742 = vmatmul.mubr.f32.gmra.mrb[0].mxu0 %v1644
        %v1743 = vpop.f32.mrb[0].mxu0
        %v1744 = vadd.f32 0.0, %v1743
        %v1745 = vpop.f32.mrb[0].mxu0
        %1746 = vmatprep.mubr.f32.mxu0 0.0
        %1747 = vmatmul.mubr.f32.gmra.mrb[0].mxu0 %v1647
        %v1748 = vpop.f32.mrb[0].mxu0
        %v1749 = vadd.f32 0.0, %v1748
        %v1750 = vpop.f32.mrb[0].mxu0
        %1751 = vmatprep.mubr.f32.mxu0 0.0
        %1752 = vmatmul.mubr.f32.gmra.mrb[0].mxu0 %v1650
        %v1753 = vpop.f32.mrb[0].mxu0
        %v1754 = vadd.f32 0.0, %v1753
        %v1755 = vpop.f32.mrb[0].mxu0
        %1756 = vdwg.mxu0
        %v1757 = vld [vmem:[%s13] sm:$0x1]
        %v1758 = vld [vmem:[%s14] sm:$0x1]
        %v1759 = vsel %vm608, %v1719, 0.0
        %1760 = vadd.xlane.f32.xlu0 %v1759
        %v1761 = vpop.xlane.xlu0 %1760
        %v1762 = vsel %vm608, %v1724, 0.0
        %1763 = vadd.xlane.f32.xlu0 %v1762
        %v1764 = vpop.xlane.xlu0 %1763
        %v1765 = vsel %vm608, %v1729, 0.0
        %1766 = vadd.xlane.f32.xlu0 %v1765
        %v1767 = vpop.xlane.xlu0 %1766
        %v1768 = vsel %vm608, %v1734, 0.0
        %1769 = vadd.xlane.f32.xlu0 %v1768
        %v1770 = vpop.xlane.xlu0 %1769
        %v1771 = vsel %vm608, %v1739, 0.0
        %1772 = vadd.xlane.f32.xlu0 %v1771
        %v1773 = vpop.xlane.xlu0 %1772
        %v1774 = vsel %vm608, %v1744, 0.0
        %1775 = vadd.xlane.f32.xlu0 %v1774
        %v1776 = vpop.xlane.xlu0 %1775
        %v1777 = vsel %vm608, %v1749, 0.0
        %1778 = vadd.xlane.f32.xlu0 %v1777
        %v1779 = vpop.xlane.xlu0 %1778
        %v1780 = vsel %vm608, %v1754, 0.0
        %1781 = vadd.xlane.f32.xlu0 %v1780
        %v1782 = vpop.xlane.xlu0 %1781
        %v1783 = vmul.f32 %v1761, %v764
        %v1784 = vmul.f32 %v1764, %v764
        %v1785 = vmul.f32 %v1767, %v764
        %v1786 = vmul.f32 %v1770, %v764
        %v1787 = vmul.f32 %v1773, %v764
        %v1788 = vmul.f32 %v1776, %v764
        %v1789 = vmul.f32 %v1779, %v764
        %v1790 = vmul.f32 %v1782, %v764
        %v1791 = vsub.f32 %v1719, %v1783
        %v1792 = vsub.f32 %v1724, %v1784
        %v1793 = vsub.f32 %v1729, %v1785
        %v1794 = vsub.f32 %v1734, %v1786
        %v1795 = vsub.f32 %v1739, %v1787
        %v1796 = vsub.f32 %v1744, %v1788
        %v1797 = vsub.f32 %v1749, %v1789
        %v1798 = vsub.f32 %v1754, %v1790
        %v1799 = vmul.f32 %v1791, %v1791
        %v1800 = vmul.f32 %v1792, %v1792
        %v1801 = vmul.f32 %v1793, %v1793
        %v1802 = vmul.f32 %v1794, %v1794
        %v1803 = vmul.f32 %v1795, %v1795
        %v1804 = vmul.f32 %v1796, %v1796
        %v1805 = vmul.f32 %v1797, %v1797
        %v1806 = vmul.f32 %v1798, %v1798
        %v1807 = vsel %vm608, %v1799, 0.0
        %1808 = vadd.xlane.f32.xlu0 %v1807
        %v1809 = vpop.xlane.xlu0 %1808
        %v1810 = vsel %vm608, %v1800, 0.0
        %1811 = vadd.xlane.f32.xlu0 %v1810
        %v1812 = vpop.xlane.xlu0 %1811
        %v1813 = vsel %vm608, %v1801, 0.0
        %1814 = vadd.xlane.f32.xlu0 %v1813
        %v1815 = vpop.xlane.xlu0 %1814
        %v1816 = vsel %vm608, %v1802, 0.0
        %1817 = vadd.xlane.f32.xlu0 %v1816
        %v1818 = vpop.xlane.xlu0 %1817
        %v1819 = vsel %vm608, %v1803, 0.0
        %1820 = vadd.xlane.f32.xlu0 %v1819
        %v1821 = vpop.xlane.xlu0 %1820
        %v1822 = vsel %vm608, %v1804, 0.0
        %1823 = vadd.xlane.f32.xlu0 %v1822
        %v1824 = vpop.xlane.xlu0 %1823
        %v1825 = vsel %vm608, %v1805, 0.0
        %1826 = vadd.xlane.f32.xlu0 %v1825
        %v1827 = vpop.xlane.xlu0 %1826
        %v1828 = vsel %vm608, %v1806, 0.0
        %1829 = vadd.xlane.f32.xlu0 %v1828
        %v1830 = vpop.xlane.xlu0 %1829
        %v1831 = vmul.f32 %v1809, %v764
        %v1832 = vmul.f32 %v1812, %v764
        %v1833 = vmul.f32 %v1815, %v764
        %v1834 = vmul.f32 %v1818, %v764
        %v1835 = vmul.f32 %v1821, %v764
        %v1836 = vmul.f32 %v1824, %v764
        %v1837 = vmul.f32 %v1827, %v764
        %v1838 = vmul.f32 %v1830, %v764
        %v1839 = vadd.f32 %v1831, 1e-06
        %v1840 = vadd.f32 %v1832, 1e-06
        %v1841 = vadd.f32 %v1833, 1e-06
        %v1842 = vadd.f32 %v1834, 1e-06
        %v1843 = vadd.f32 %v1835, 1e-06
        %v1844 = vadd.f32 %v1836, 1e-06
        %v1845 = vadd.f32 %v1837, 1e-06
        %v1846 = vadd.f32 %v1838, 1e-06
        %v1847 = vrsqrt.pop %v1839
        %v1848 = vrsqrt.pop %v1840
        %v1849 = vrsqrt.pop %v1841
        %v1850 = vrsqrt.pop %v1842
        %v1851 = vrsqrt.pop %v1843
        %v1852 = vrsqrt.pop %v1844
        %v1853 = vrsqrt.pop %v1845
        %v1854 = vrsqrt.pop %v1846
        %v1855 = vmul.f32 %v1791, %v1847
        %v1856 = vmul.f32 %v1792, %v1848
        %v1857 = vmul.f32 %v1793, %v1849
        %v1858 = vmul.f32 %v1794, %v1850
        %v1859 = vmul.f32 %v1795, %v1851
        %v1860 = vmul.f32 %v1796, %v1852
        %v1861 = vmul.f32 %v1797, %v1853
        %v1862 = vmul.f32 %v1798, %v1854
        %v1864 = vlaneseq
        %v1865 = vshrl.u32 %v1864, 7
        %v1866 = vsub.s32 0, %v1865
        %v1867 = vrot.slane %v1757, %v1866
        %v1869 = vmul.f32 %v1855, %v1867
        %v1870 = vmul.f32 %v1856, %v1867
        %v1871 = vmul.f32 %v1857, %v1867
        %v1872 = vmul.f32 %v1858, %v1867
        %v1873 = vmul.f32 %v1859, %v1867
        %v1874 = vmul.f32 %v1860, %v1867
        %v1875 = vmul.f32 %v1861, %v1867
        %v1876 = vmul.f32 %v1862, %v1867
        %v1878 = vlaneseq
        %v1879 = vshrl.u32 %v1878, 7
        %v1880 = vsub.s32 0, %v1879
        %v1881 = vrot.slane %v1758, %v1880
        %v1883 = vadd.f32 %v1869, %v1881
        %v1884 = vadd.f32 %v1870, %v1881
        %v1885 = vadd.f32 %v1871, %v1881
        %v1886 = vadd.f32 %v1872, %v1881
        %v1887 = vadd.f32 %v1873, %v1881
        %v1888 = vadd.f32 %v1874, %v1881
        %v1889 = vadd.f32 %v1875, %v1881
        %v1890 = vadd.f32 %v1876, %v1881
        %v1891 = vadd.f32 %v1883, %v596
        %v1892 = vadd.f32 %v1884, %v597
        %v1893 = vadd.f32 %v1885, %v598
        %v1894 = vadd.f32 %v1886, %v599
        %v1895 = vadd.f32 %v1887, %v600
        %v1896 = vadd.f32 %v1888, %v601
        %v1897 = vadd.f32 %v1889, %v602
        %v1898 = vadd.f32 %v1890, %v603
        %v1899 = vxor.u32 %v1891, 2147483648
        %v1900 = vxor.u32 %v1892, 2147483648
        %v1901 = vxor.u32 %v1893, 2147483648
        %v1902 = vxor.u32 %v1894, 2147483648
        %v1903 = vxor.u32 %v1895, 2147483648
        %v1904 = vxor.u32 %v1896, 2147483648
        %v1905 = vxor.u32 %v1897, 2147483648
        %v1906 = vxor.u32 %v1898, 2147483648
        %v1907 = vmul.f32 %v1899, 1.442695
        %v1908 = vpow.pop %v1907
        %v1909 = vmul.f32 %v1900, 1.442695
        %v1910 = vpow.pop %v1909
        %v1911 = vmul.f32 %v1901, 1.442695
        %v1912 = vpow.pop %v1911
        %v1913 = vmul.f32 %v1902, 1.442695
        %v1914 = vpow.pop %v1913
        %v1915 = vmul.f32 %v1903, 1.442695
        %v1916 = vpow.pop %v1915
        %v1917 = vmul.f32 %v1904, 1.442695
        %v1918 = vpow.pop %v1917
        %v1919 = vmul.f32 %v1905, 1.442695
        %v1920 = vpow.pop %v1919
        %v1921 = vmul.f32 %v1906, 1.442695
        %v1922 = vpow.pop %v1921
        %v1923 = vadd.f32 %v1908, 1.0
        %v1924 = vadd.f32 %v1910, 1.0
        %v1925 = vadd.f32 %v1912, 1.0
        %v1926 = vadd.f32 %v1914, 1.0
        %v1927 = vadd.f32 %v1916, 1.0
        %v1928 = vadd.f32 %v1918, 1.0
        %v1929 = vadd.f32 %v1920, 1.0
        %v1930 = vadd.f32 %v1922, 1.0
        %v1931 = vrcp.pop %v1923
        %v1932 = vmul.f32 1.0, %v1931
        %v1933 = vrcp.pop %v1924
        %v1934 = vmul.f32 1.0, %v1933
        %v1935 = vrcp.pop %v1925
        %v1936 = vmul.f32 1.0, %v1935
        %v1937 = vrcp.pop %v1926
        %v1938 = vmul.f32 1.0, %v1937
        %v1939 = vrcp.pop %v1927
        %v1940 = vmul.f32 1.0, %v1939
        %v1941 = vrcp.pop %v1928
        %v1942 = vmul.f32 1.0, %v1941
        %v1943 = vrcp.pop %v1929
        %v1944 = vmul.f32 1.0, %v1943
        %v1945 = vrcp.pop %v1930
        %v1946 = vmul.f32 1.0, %v1945
        %v1947 = vmul.f32 %v1891, %v1932
        %v1948 = vmul.f32 %v1892, %v1934
        %v1949 = vmul.f32 %v1893, %v1936
        %v1950 = vmul.f32 %v1894, %v1938
        %v1951 = vmul.f32 %v1895, %v1940
        %v1952 = vmul.f32 %v1896, %v1942
        %v1953 = vmul.f32 %v1897, %v1944
        %v1954 = vmul.f32 %v1898, %v1946
        %1955 = vst.msk [vmem:[%s579] sm:$0xff] %vm608, %v1947
        %1956 = vst.msk [vmem:[%s579 + $0x8] sm:$0xff] %vm608, %v1948
        %1957 = vst.msk [vmem:[%s579 + $0x10] sm:$0xff] %vm608, %v1949
        %1958 = vst.msk [vmem:[%s579 + $0x18] sm:$0xff] %vm608, %v1950
        %1959 = vst.msk [vmem:[%s579 + $0x20] sm:$0xff] %vm608, %v1951
        %1960 = vst.msk [vmem:[%s579 + $0x28] sm:$0xff] %vm608, %v1952
        %1961 = vst.msk [vmem:[%s579 + $0x30] sm:$0xff] %vm608, %v1953
        %1962 = vst.msk [vmem:[%s579 + $0x38] sm:$0xff] %vm608, %v1954
        %s1963 = sand.u32 %s363, 1
        %s1964 = scalar_lea.sflag [#allocation5], %s1963
        %s1965 = sand.u32 %s363, 1
        %s1966 = smul.addr %s1965, 64
        %s1967 = scalar_lea.vmem [#allocation14], %s1966
        // Predicated region
        $region105: #{tpu_custom_call.1} parent=79 // pred_check
          %p1968 = pneg %p373
        $region106: #{tpu_custom_call.1} parent=79 // pred_check_branch
          %1970 = sbr.rel (%p1968) target = $region108
        $region107: #{tpu_custom_call.1} parent=79 // pred_region
          %s1972 = ssub.s32 1024, 1024
          %1973 = vsyncadd %s1964, %s1972
          %s1974 = smul.addr %s35, 8
          %s1975 = smul.addr %s1974, 128
          %s1976 = scalar_lea.hbm %s15, %s1975
          %s1977 = sshll.u32 %s1967, 4
          %s1978 = int_to_ptr.vmem [resolvable:$true] %s1977
          %1983 = dma.vmem_to_hbm [thread:$0]  %s1978, 1024, %s1976, %s1964, 128, 128, 8
        $region108: #{tpu_custom_call.1} parent=79 // pred_fallthru
          _
      $region80: #{tpu_custom_call.1} parent=5 // pred_fallthru
        _
      %p1984 = scmp.le.s32.totalorder 2, %s30
      // Predicated region
      $region109: #{tpu_custom_call.1} parent=5 // pred_check
        %p1985 = pneg %p1984
      $region110: #{tpu_custom_call.1} parent=5 // pred_check_branch
        %1987 = sbr.rel (%p1985) target = $region112
      $region111: #{tpu_custom_call.1} parent=5 // pred_region
        %s1988 = ssub.s32 %s30, 2
        // Predicated region
        $region113: #{tpu_custom_call.1} parent=111 // pred_check
          %p1989 = pneg %p379
        $region114: #{tpu_custom_call.1} parent=111 // pred_check_branch
          %1991 = sbr.rel (%p1989) target = $region116
        $region115: #{tpu_custom_call.1} parent=111 // pred_region
          %s1992 = sand.u32 %s364, 1
          %s1993 = scalar_lea.sflag [#allocation5], %s1992
          %s1994 = sand.u32 %s364, 1
          %s1995 = smul.addr %s1994, 64
          %s1996 = scalar_lea.vmem [#allocation14], %s1995
          %1997 = dma.done %s1993, 1024
        $region116: #{tpu_custom_call.1} parent=111 // pred_fallthru
          _
      $region112: #{tpu_custom_call.1} parent=5 // pred_fallthru
        _
    $region6: #{tpu_custom_call.1} parent=1 // loop_footer
      %s34 = sadd.s32 1, %s30
    $region7: #{tpu_custom_call.1} parent=1 // loop_footer_branch
      %29 = sbr.rel target = $region3
    $region8: #{tpu_custom_call.1} parent=1 // loop_exit
      _
    %1998 = vsyncpa [#allocation4], 1
    %s1999 = scalar_lea.sflag [#allocation4], 1
    %2000 = vsyncpa %s1999, 1
    %2001 = vsyncpa [#allocation7], 1
    %2002 = vsyncpa [#allocation10], 1
    %2003 = vsyncpa [#allocation13], 1
    %2004 = vsyncpa [#allocation5], 1
    %s2005 = scalar_lea.sflag [#allocation5], 1
    %2006 = vsyncpa %s2005, 1

</llo_original>
